<compile_context>
chip_gen: v5e
topology: v5e:2x2
jax: 0.10.0
libtpu: 0.0.40
codegen_flags: <defaults>
</compile_context>

<pallas_src>
import jax
import jax.numpy as jnp
from jax.experimental import pallas as pl
from jax.experimental.pallas import tpu as pltpu


def _round_up(x, m):
    return ((x + m - 1) // m) * m


def _cdiv(a, b):
    return -(-a // b)


# ----------------------------------------------------------------------------
# Kernel
# ----------------------------------------------------------------------------
def fc_model_kernel(x_ref, w1_ref, b1_ref, w2_ref, b2_ref, w3_ref, b3_ref,
                    wh_ref, bh_ref, out_ref):
    """Whole FCModel forward for one batch tile; weights resident in VMEM."""
    cd = w1_ref.dtype  # compute dtype for MXU operands (e.g. bf16)

    # x arrives in the producer dtype (f32); cast to the MXU operand dtype
    # here so the glue never writes an extra bf16 copy of x to HBM.
    x = x_ref[...].astype(cd)

    # embedder layer 1 (f32 accumulate, f32 bias + ReLU, cast back for MXU)
    h = jnp.dot(x, w1_ref[...], preferred_element_type=jnp.float32) + b1_ref[...]
    h = jnp.maximum(h, 0.0).astype(cd)

    # embedder layer 2
    h = jnp.dot(h, w2_ref[...], preferred_element_type=jnp.float32) + b2_ref[...]
    h = jnp.maximum(h, 0.0).astype(cd)

    # pre_valpi (Linear + ReLU)
    h = jnp.dot(h, w3_ref[...], preferred_element_type=jnp.float32) + b3_ref[...]
    h = jnp.maximum(h, 0.0).astype(cd)

    # fused policy + value head: lane-dense (TB, 128k) output, unmasked store,
    # cast to the (bf16) output dtype to halve writeback traffic.
    out = jnp.dot(h, wh_ref[...], preferred_element_type=jnp.float32) + bh_ref[...]
    out_ref[...] = out.astype(out_ref.dtype)


# ----------------------------------------------------------------------------
# One-time parameter preparation (transpose, pad, fuse heads, cast)
# ----------------------------------------------------------------------------
def prepare_params(params, compute_dtype=jnp.bfloat16):
    """Convert PyTorch-layout params into kernel-ready arrays (call once).

    params: dict of PyTorch-convention weights:
      w1 (H, D), b1 (H,), w2 (H, H), b2 (H,), w3 (H, H), b3 (H,),
      wpi (A, H), bpi (A,), wv (1, H), bv (1,)
    """
    H, D = params["w1"].shape
    A = params["wpi"].shape[0]

    D_pad = _round_up(D, 128)
    H_pad = _round_up(H, 128)
    AV_pad = _round_up(A + 1, 128)   # pi cols [0, A), value col A, zeros after

    def pad_w(w, rows, cols):
        w = w.astype(jnp.float32)
        return jnp.pad(w, ((0, rows - w.shape[0]), (0, cols - w.shape[1])))

    def pad_b(b, n):
        b = b.astype(jnp.float32)
        return jnp.pad(b, (0, n - b.shape[0])).reshape(1, n)

    w1 = pad_w(params["w1"].T, D_pad, H_pad)
    w2 = pad_w(params["w2"].T, H_pad, H_pad)
    w3 = pad_w(params["w3"].T, H_pad, H_pad)
    w_head = jnp.concatenate(
        [params["wpi"].T.astype(jnp.float32), params["wv"].T.astype(jnp.float32)],
        axis=1)
    w_head = pad_w(w_head, H_pad, AV_pad)  # padded columns are exactly zero

    b_head = pad_b(jnp.concatenate(
        [params["bpi"].astype(jnp.float32), params["bv"].astype(jnp.float32)]),
        AV_pad)

    cd = compute_dtype
    return dict(
        w1=w1.astype(cd), b1=pad_b(params["b1"], H_pad),
        w2=w2.astype(cd), b2=pad_b(params["b2"], H_pad),
        w3=w3.astype(cd), b3=pad_b(params["b3"], H_pad),
        w_head=w_head.astype(cd), b_head=b_head,
        dims=dict(D=D, D_pad=D_pad, H=H, H_pad=H_pad, A=A, AV_pad=AV_pad),
        compute_dtype=cd,
    )


# ----------------------------------------------------------------------------
# Tile / VMEM sizing helpers
# ----------------------------------------------------------------------------
def _choose_tile_b(B, max_tile_b=1024):
    """Batch-tile rows: biggest that fits, 16-row aligned, >=2 tiles on big B.

    Per-grid-step overhead (~0.35 us) dominates for small tiles, so prefer big
    tiles; but when the batch is large, keep at least 2 grid steps so v7x's
    two TensorCores both get work (extra steps are near-free on v5e/v6e).
    16-row multiples avoid half-packed bf16 vregs / masked stores (v5e).
    """
    min_tiles = 2 if B >= 512 else 1
    n_tiles = max(min_tiles, _cdiv(B, max_tile_b))
    return _round_up(_cdiv(B, n_tiles), 16)


def _vmem_limit_bytes(tile_b, D_pad, H_pad, AV_pad, x_itemsize, cd_itemsize,
                      out_itemsize, weight_buffers):
    """Explicit scoped-VMEM budget from the real footprint."""
    x_bufs = 2 * tile_b * D_pad * x_itemsize           # double-buffered x tile
    out_bufs = 2 * tile_b * AV_pad * out_itemsize      # double-buffered out tile
    w_bytes = (D_pad * H_pad + 2 * H_pad * H_pad + H_pad * AV_pad) * cd_itemsize
    b_bytes = (3 * H_pad + AV_pad) * 4
    weights = weight_buffers * (w_bytes + b_bytes)
    interm = 2 * tile_b * H_pad * (4 + cd_itemsize)    # in-kernel h temporaries
    total = x_bufs + out_bufs + weights + interm
    # >= 32 MiB (v5e's 16 MiB default is the first thing that breaks),
    # <= 60 MiB (headroom under v7x's 64 MiB physical VMEM).
    return min(max(int(1.5 * total) + (2 << 20), 32 << 20), 60 << 20)


# ----------------------------------------------------------------------------
# Forward glue
# ----------------------------------------------------------------------------
def fc_model_forward(x_nchw, prepped, max_tile_b=1024):
    """Returns (val, pi) with shapes (B, 1) and (B, A), matching FCModel."""
    dims = prepped["dims"]
    cd = prepped["compute_dtype"]
    D, D_pad, H_pad, A, AV_pad = (
        dims["D"], dims["D_pad"], dims["H_pad"], dims["A"], dims["AV_pad"])

    B = x_nchw.shape[0]
    x_flat = x_nchw.reshape(B, -1)
    assert x_flat.shape[1] == D, "flattened input does not match prepared params"

    tile_b = _choose_tile_b(B, max_tile_b)
    grid_steps = _cdiv(B, tile_b)
    B_pad = tile_b * grid_steps

    # Keep x in its producer dtype (no astype pass); pad only if needed.
    if B_pad != B or D_pad != D:
        x_p = jnp.pad(x_flat, ((0, B_pad - B), (0, D_pad - D)))
    else:
        x_p = x_flat

    out_dtype = jnp.bfloat16
    # TODO(synk): if bf16 precision on the value (critic) column ever matters
    # downstream, emit it as a separate small f32 output instead.

    def build(single_buffer_weights):
        def resident(shape):
            # Constant block index -> DMA'd once, stays VMEM-resident across
            # batch tiles; single-buffer to halve weight VMEM when supported.
            if single_buffer_weights and hasattr(pl, "Buffered"):
                return pl.BlockSpec(shape, lambda i: (0, 0),
                                    pipeline_mode=pl.Buffered(1))
            return pl.BlockSpec(shape, lambda i: (0, 0))

        vmem_limit = _vmem_limit_bytes(
            tile_b, D_pad, H_pad, AV_pad,
            x_p.dtype.itemsize, jnp.dtype(cd).itemsize,
            jnp.dtype(out_dtype).itemsize,
            weight_buffers=1 if single_buffer_weights else 2)

        return pl.pallas_call(
            fc_model_kernel,
            out_shape=jax.ShapeDtypeStruct((B_pad, AV_pad), out_dtype),
            grid=(grid_steps,),
            in_specs=[
                pl.BlockSpec((tile_b, D_pad), lambda i: (i, 0)),   # x (batch-tiled)
                resident((D_pad, H_pad)), resident((1, H_pad)),    # W1, b1
                resident((H_pad, H_pad)), resident((1, H_pad)),    # W2, b2
                resident((H_pad, H_pad)), resident((1, H_pad)),    # W3, b3
                resident((H_pad, AV_pad)), resident((1, AV_pad)),  # fused head
            ],
            out_specs=pl.BlockSpec((tile_b, AV_pad), lambda i: (i, 0)),
            compiler_params=pltpu.CompilerParams(
                dimension_semantics=("parallel",),
                vmem_limit_bytes=vmem_limit),
        )

    args = (x_p,
            prepped["w1"], prepped["b1"],
            prepped["w2"], prepped["b2"],
            prepped["w3"], prepped["b3"],
            prepped["w_head"], prepped["b_head"])

    try:
        out = build(single_buffer_weights=True)(*args)
    except Exception:
        # Fallback for JAX versions that reject pipeline_mode=pl.Buffered(1):
        # identical kernel, default double-buffered invariant inputs.
        out = build(single_buffer_weights=False)(*args)

    pi = out[:B, :A].astype(jnp.float32)
    val = out[:B, A:A + 1].astype(jnp.float32)
    return val, pi


# ----------------------------------------------------------------------------
# Demo / self-check
# ----------------------------------------------------------------------------
def init_linear(key, out_dim, in_dim):
    """Deterministic PyTorch-style Linear init: U(-1/sqrt(in), 1/sqrt(in))."""
    kw, kb = jax.random.split(key)
    bound = 1.0 / jnp.sqrt(jnp.float32(in_dim))
    w = jax.random.uniform(kw, (out_dim, in_dim), jnp.float32, -bound, bound)
    b = jax.random.uniform(kb, (out_dim,), jnp.float32, -bound, bound)
    return w, b


def ref_forward(x_nchw, params, compute_dtype):
    """Pure-JAX reference mirroring the kernel's dtype casting."""
    cd = compute_dtype
    xf = x_nchw.reshape(x_nchw.shape[0], -1).astype(jnp.float32)

    def lin(h, w, b):
        return (jnp.dot(h.astype(cd), w.T.astype(cd),
                        preferred_element_type=jnp.float32)
                + b.astype(jnp.float32))

    h = jnp.maximum(lin(xf, params["w1"], params["b1"]), 0.0)
    h = jnp.maximum(lin(h, params["w2"], params["b2"]), 0.0)
    h = jnp.maximum(lin(h, params["w3"], params["b3"]), 0.0)
    pi = lin(h, params["wpi"], params["bpi"])
    val = lin(h, params["wv"], params["bv"])
    return val, pi


if __name__ == "__main__":
    # Small shapes consistent with the module's (B, C, H, W) state input.
    B, C, Himg, Wimg = 2, 4, 16, 16
    D = C * Himg * Wimg          # flattened input_space (1024)
    H_SIZE = 128                 # hidden size (module default 200; small here)
    A = 8                        # output_space (discrete action count)

    key = jax.random.PRNGKey(0)
    kx, k1, k2, k3, kpi, kv = jax.random.split(key, 6)

    x = jax.random.normal(kx, (B, C, Himg, Wimg), jnp.float32)

    w1, b1 = init_linear(k1, H_SIZE, D)        # embedder layer 1
    w2, b2 = init_linear(k2, H_SIZE, H_SIZE)   # embedder layer 2
    w3, b3 = init_linear(k3, H_SIZE, H_SIZE)   # pre_valpi
    wpi, bpi = init_linear(kpi, A, H_SIZE)     # pi head
    wv, bv = init_linear(kv, 1, H_SIZE)        # value head

    params = dict(w1=w1, b1=b1, w2=w2, b2=b2, w3=w3, b3=b3,
                  wpi=wpi, bpi=bpi, wv=wv, bv=bv)

    compute_dtype = jnp.bfloat16
    prepped = prepare_params(params, compute_dtype=compute_dtype)

    val, pi = fc_model_forward(x, prepped)
    jax.block_until_ready((val, pi))

    # Reference check (same bf16 operand casting, f32 accumulation; kernel
    # output additionally rounds through bf16 -> 5e-2 tolerance).
    val_ref, pi_ref = ref_forward(x, params, compute_dtype)
    assert val.shape == (B, 1) and pi.shape == (B, A)
    assert jnp.allclose(val, val_ref, atol=5e-2, rtol=5e-2), "value mismatch"
    assert jnp.allclose(pi, pi_ref, atol=5e-2, rtol=5e-2), "pi mismatch"

    print("KERNEL_OK")
</pallas_src>

<mosaic_0001>
module attributes {stable_mosaic.version = 11 : i64} {
  func.func @fc_model_kernel(%arg0: i32, %arg1: memref<16x1024xf32, #tpu.memory_space<vmem>>, %arg2: memref<1024x128xbf16, #tpu.memory_space<vmem>>, %arg3: memref<1x128xf32, #tpu.memory_space<vmem>>, %arg4: memref<128x128xbf16, #tpu.memory_space<vmem>>, %arg5: memref<1x128xf32, #tpu.memory_space<vmem>>, %arg6: memref<128x128xbf16, #tpu.memory_space<vmem>>, %arg7: memref<1x128xf32, #tpu.memory_space<vmem>>, %arg8: memref<128x128xbf16, #tpu.memory_space<vmem>>, %arg9: memref<1x128xf32, #tpu.memory_space<vmem>>, %arg10: memref<16x128xbf16, #tpu.memory_space<vmem>>) attributes {dimension_semantics = [#tpu.dimension_semantics<parallel>], iteration_bounds = array<i64: 1>, scalar_prefetch = 0 : i64, scratch_operands = 0 : i64, tpu.core_type = #tpu.core_type<tc>, window_params = [{transform_indices = @transform_0, window_bounds = array<i64: 16, 1024>}, {pipeline_mode = #tpu.pipeline_mode<synchronous>, transform_indices = @transform_1, window_bounds = array<i64: 1024, 128>}, {pipeline_mode = #tpu.pipeline_mode<synchronous>, transform_indices = @transform_2, window_bounds = array<i64: 1, 128>}, {pipeline_mode = #tpu.pipeline_mode<synchronous>, transform_indices = @transform_3, window_bounds = array<i64: 128, 128>}, {pipeline_mode = #tpu.pipeline_mode<synchronous>, transform_indices = @transform_4, window_bounds = array<i64: 1, 128>}, {pipeline_mode = #tpu.pipeline_mode<synchronous>, transform_indices = @transform_5, window_bounds = array<i64: 128, 128>}, {pipeline_mode = #tpu.pipeline_mode<synchronous>, transform_indices = @transform_6, window_bounds = array<i64: 1, 128>}, {pipeline_mode = #tpu.pipeline_mode<synchronous>, transform_indices = @transform_7, window_bounds = array<i64: 128, 128>}, {pipeline_mode = #tpu.pipeline_mode<synchronous>, transform_indices = @transform_8, window_bounds = array<i64: 1, 128>}, {transform_indices = @transform_9, window_bounds = array<i64: 16, 128>}]} {
    %c0 = arith.constant 0 : index
    %c0_0 = arith.constant 0 : index
    %0 = vector.load %arg1[%c0, %c0_0] : memref<16x1024xf32, #tpu.memory_space<vmem>>, vector<16x1024xf32>
    %1 = arith.truncf %0 : vector<16x1024xf32> to vector<16x1024xbf16>
    %c0_1 = arith.constant 0 : index
    %c0_2 = arith.constant 0 : index
    %2 = vector.load %arg2[%c0_1, %c0_2] : memref<1024x128xbf16, #tpu.memory_space<vmem>>, vector<1024x128xbf16>
    %cst = arith.constant dense<0.000000e+00> : vector<16x128xf32>
    %3 = tpu.matmul %1, %2, %cst {dimension_numbers = #tpu.dot_dimension_numbers<[1], [0], [0], [1], [0, 0, 1, 1], [], []>} : vector<16x1024xbf16>, vector<1024x128xbf16>, vector<16x128xf32> -> vector<16x128xf32>
    %c0_3 = arith.constant 0 : index
    %c0_4 = arith.constant 0 : index
    %4 = vector.load %arg3[%c0_3, %c0_4] : memref<1x128xf32, #tpu.memory_space<vmem>>, vector<1x128xf32>
    %5 = vector.broadcast %4 : vector<1x128xf32> to vector<16x128xf32>
    %6 = arith.addf %3, %5 : vector<16x128xf32>
    %cst_5 = arith.constant 0.000000e+00 : f32
    %7 = vector.broadcast %cst_5 : f32 to vector<16x128xf32>
    %8 = arith.maximumf %6, %7 : vector<16x128xf32>
    %9 = arith.truncf %8 : vector<16x128xf32> to vector<16x128xbf16>
    %c0_6 = arith.constant 0 : index
    %c0_7 = arith.constant 0 : index
    %10 = vector.load %arg4[%c0_6, %c0_7] : memref<128x128xbf16, #tpu.memory_space<vmem>>, vector<128x128xbf16>
    %cst_8 = arith.constant dense<0.000000e+00> : vector<16x128xf32>
    %11 = tpu.matmul %9, %10, %cst_8 {dimension_numbers = #tpu.dot_dimension_numbers<[1], [0], [0], [1], [0, 0, 1, 1], [], []>} : vector<16x128xbf16>, vector<128x128xbf16>, vector<16x128xf32> -> vector<16x128xf32>
    %c0_9 = arith.constant 0 : index
    %c0_10 = arith.constant 0 : index
    %12 = vector.load %arg5[%c0_9, %c0_10] : memref<1x128xf32, #tpu.memory_space<vmem>>, vector<1x128xf32>
    %13 = vector.broadcast %12 : vector<1x128xf32> to vector<16x128xf32>
    %14 = arith.addf %11, %13 : vector<16x128xf32>
    %cst_11 = arith.constant 0.000000e+00 : f32
    %15 = vector.broadcast %cst_11 : f32 to vector<16x128xf32>
    %16 = arith.maximumf %14, %15 : vector<16x128xf32>
    %17 = arith.truncf %16 : vector<16x128xf32> to vector<16x128xbf16>
    %c0_12 = arith.constant 0 : index
    %c0_13 = arith.constant 0 : index
    %18 = vector.load %arg6[%c0_12, %c0_13] : memref<128x128xbf16, #tpu.memory_space<vmem>>, vector<128x128xbf16>
    %cst_14 = arith.constant dense<0.000000e+00> : vector<16x128xf32>
    %19 = tpu.matmul %17, %18, %cst_14 {dimension_numbers = #tpu.dot_dimension_numbers<[1], [0], [0], [1], [0, 0, 1, 1], [], []>} : vector<16x128xbf16>, vector<128x128xbf16>, vector<16x128xf32> -> vector<16x128xf32>
    %c0_15 = arith.constant 0 : index
    %c0_16 = arith.constant 0 : index
    %20 = vector.load %arg7[%c0_15, %c0_16] : memref<1x128xf32, #tpu.memory_space<vmem>>, vector<1x128xf32>
    %21 = vector.broadcast %20 : vector<1x128xf32> to vector<16x128xf32>
    %22 = arith.addf %19, %21 : vector<16x128xf32>
    %cst_17 = arith.constant 0.000000e+00 : f32
    %23 = vector.broadcast %cst_17 : f32 to vector<16x128xf32>
    %24 = arith.maximumf %22, %23 : vector<16x128xf32>
    %25 = arith.truncf %24 : vector<16x128xf32> to vector<16x128xbf16>
    %c0_18 = arith.constant 0 : index
    %c0_19 = arith.constant 0 : index
    %26 = vector.load %arg8[%c0_18, %c0_19] : memref<128x128xbf16, #tpu.memory_space<vmem>>, vector<128x128xbf16>
    %cst_20 = arith.constant dense<0.000000e+00> : vector<16x128xf32>
    %27 = tpu.matmul %25, %26, %cst_20 {dimension_numbers = #tpu.dot_dimension_numbers<[1], [0], [0], [1], [0, 0, 1, 1], [], []>} : vector<16x128xbf16>, vector<128x128xbf16>, vector<16x128xf32> -> vector<16x128xf32>
    %c0_21 = arith.constant 0 : index
    %c0_22 = arith.constant 0 : index
    %28 = vector.load %arg9[%c0_21, %c0_22] : memref<1x128xf32, #tpu.memory_space<vmem>>, vector<1x128xf32>
    %29 = vector.broadcast %28 : vector<1x128xf32> to vector<16x128xf32>
    %30 = arith.addf %27, %29 : vector<16x128xf32>
    %31 = arith.truncf %30 : vector<16x128xf32> to vector<16x128xbf16>
    %c0_23 = arith.constant 0 : index
    %c0_24 = arith.constant 0 : index
    %32 = vector.load %arg10[%c0_23, %c0_24] : memref<16x128xbf16, #tpu.memory_space<vmem>>, vector<16x128xbf16>
    tpu.vector_store %arg10[%c0_23, %c0_24], %31 {strides = array<i32>} : memref<16x128xbf16, #tpu.memory_space<vmem>>, vector<16x128xbf16>,
    return
  }
  func.func @transform_0(%arg0: i32) -> (i32, i32) {
    %c0_i32 = arith.constant 0 : i32
    %c0_i32_0 = arith.constant 0 : i32
    return %arg0, %c0_i32 : i32, i32
  }
  func.func @transform_1(%arg0: i32) -> (i32, i32) {
    %c0_i32 = arith.constant 0 : i32
    %c0_i32_0 = arith.constant 0 : i32
    %c0_i32_1 = arith.constant 0 : i32
    return %c0_i32, %c0_i32_0 : i32, i32
  }
  func.func @transform_2(%arg0: i32) -> (i32, i32) {
    %c0_i32 = arith.constant 0 : i32
    %c0_i32_0 = arith.constant 0 : i32
    %c0_i32_1 = arith.constant 0 : i32
    return %c0_i32, %c0_i32_0 : i32, i32
  }
  func.func @transform_3(%arg0: i32) -> (i32, i32) {
    %c0_i32 = arith.constant 0 : i32
    %c0_i32_0 = arith.constant 0 : i32
    %c0_i32_1 = arith.constant 0 : i32
    return %c0_i32, %c0_i32_0 : i32, i32
  }
  func.func @transform_4(%arg0: i32) -> (i32, i32) {
    %c0_i32 = arith.constant 0 : i32
    %c0_i32_0 = arith.constant 0 : i32
    %c0_i32_1 = arith.constant 0 : i32
    return %c0_i32, %c0_i32_0 : i32, i32
  }
  func.func @transform_5(%arg0: i32) -> (i32, i32) {
    %c0_i32 = arith.constant 0 : i32
    %c0_i32_0 = arith.constant 0 : i32
    %c0_i32_1 = arith.constant 0 : i32
    return %c0_i32, %c0_i32_0 : i32, i32
  }
  func.func @transform_6(%arg0: i32) -> (i32, i32) {
    %c0_i32 = arith.constant 0 : i32
    %c0_i32_0 = arith.constant 0 : i32
    %c0_i32_1 = arith.constant 0 : i32
    return %c0_i32, %c0_i32_0 : i32, i32
  }
  func.func @transform_7(%arg0: i32) -> (i32, i32) {
    %c0_i32 = arith.constant 0 : i32
    %c0_i32_0 = arith.constant 0 : i32
    %c0_i32_1 = arith.constant 0 : i32
    return %c0_i32, %c0_i32_0 : i32, i32
  }
  func.func @transform_8(%arg0: i32) -> (i32, i32) {
    %c0_i32 = arith.constant 0 : i32
    %c0_i32_0 = arith.constant 0 : i32
    %c0_i32_1 = arith.constant 0 : i32
    return %c0_i32, %c0_i32_0 : i32, i32
  }
  func.func @transform_9(%arg0: i32) -> (i32, i32) {
    %c0_i32 = arith.constant 0 : i32
    %c0_i32_0 = arith.constant 0 : i32
    return %arg0, %c0_i32 : i32, i32
  }
}

module attributes {stable_mosaic.version = 11 : i64} {
  func.func @fc_model_kernel(%arg0: i32, %arg1: memref<16x1024xf32, #tpu.memory_space<vmem>>, %arg2: memref<1024x128xbf16, #tpu.memory_space<vmem>>, %arg3: memref<1x128xf32, #tpu.memory_space<vmem>>, %arg4: memref<128x128xbf16, #tpu.memory_space<vmem>>, %arg5: memref<1x128xf32, #tpu.memory_space<vmem>>, %arg6: memref<128x128xbf16, #tpu.memory_space<vmem>>, %arg7: memref<1x128xf32, #tpu.memory_space<vmem>>, %arg8: memref<128x128xbf16, #tpu.memory_space<vmem>>, %arg9: memref<1x128xf32, #tpu.memory_space<vmem>>, %arg10: memref<16x128xbf16, #tpu.memory_space<vmem>>) attributes {dimension_semantics = [#tpu.dimension_semantics<parallel>], iteration_bounds = array<i64: 1>, scalar_prefetch = 0 : i64, scratch_operands = 0 : i64, tpu.core_type = #tpu.core_type<tc>, window_params = [{transform_indices = @transform_0, window_bounds = array<i64: 16, 1024>}, {pipeline_mode = #tpu.pipeline_mode<synchronous>, transform_indices = @transform_1, window_bounds = array<i64: 1024, 128>}, {pipeline_mode = #tpu.pipeline_mode<synchronous>, transform_indices = @transform_2, window_bounds = array<i64: 1, 128>}, {pipeline_mode = #tpu.pipeline_mode<synchronous>, transform_indices = @transform_3, window_bounds = array<i64: 128, 128>}, {pipeline_mode = #tpu.pipeline_mode<synchronous>, transform_indices = @transform_4, window_bounds = array<i64: 1, 128>}, {pipeline_mode = #tpu.pipeline_mode<synchronous>, transform_indices = @transform_5, window_bounds = array<i64: 128, 128>}, {pipeline_mode = #tpu.pipeline_mode<synchronous>, transform_indices = @transform_6, window_bounds = array<i64: 1, 128>}, {pipeline_mode = #tpu.pipeline_mode<synchronous>, transform_indices = @transform_7, window_bounds = array<i64: 128, 128>}, {pipeline_mode = #tpu.pipeline_mode<synchronous>, transform_indices = @transform_8, window_bounds = array<i64: 1, 128>}, {transform_indices = @transform_9, window_bounds = array<i64: 16, 128>}]} {
    %c0 = arith.constant 0 : index
    %c0_0 = arith.constant 0 : index
    %0 = vector.load %arg1[%c0, %c0_0] : memref<16x1024xf32, #tpu.memory_space<vmem>>, vector<16x1024xf32>
    %1 = arith.truncf %0 : vector<16x1024xf32> to vector<16x1024xbf16>
    %c0_1 = arith.constant 0 : index
    %c0_2 = arith.constant 0 : index
    %2 = vector.load %arg2[%c0_1, %c0_2] : memref<1024x128xbf16, #tpu.memory_space<vmem>>, vector<1024x128xbf16>
    %cst = arith.constant dense<0.000000e+00> : vector<16x128xf32>
    %3 = tpu.matmul %1, %2, %cst {dimension_numbers = #tpu.dot_dimension_numbers<[1], [0], [0], [1], [0, 0, 1, 1], [], []>} : vector<16x1024xbf16>, vector<1024x128xbf16>, vector<16x128xf32> -> vector<16x128xf32>
    %c0_3 = arith.constant 0 : index
    %c0_4 = arith.constant 0 : index
    %4 = vector.load %arg3[%c0_3, %c0_4] : memref<1x128xf32, #tpu.memory_space<vmem>>, vector<1x128xf32>
    %5 = vector.broadcast %4 : vector<1x128xf32> to vector<16x128xf32>
    %6 = arith.addf %3, %5 : vector<16x128xf32>
    %cst_5 = arith.constant 0.000000e+00 : f32
    %7 = vector.broadcast %cst_5 : f32 to vector<16x128xf32>
    %8 = arith.maximumf %6, %7 : vector<16x128xf32>
    %9 = arith.truncf %8 : vector<16x128xf32> to vector<16x128xbf16>
    %c0_6 = arith.constant 0 : index
    %c0_7 = arith.constant 0 : index
    %10 = vector.load %arg4[%c0_6, %c0_7] : memref<128x128xbf16, #tpu.memory_space<vmem>>, vector<128x128xbf16>
    %cst_8 = arith.constant dense<0.000000e+00> : vector<16x128xf32>
    %11 = tpu.matmul %9, %10, %cst_8 {dimension_numbers = #tpu.dot_dimension_numbers<[1], [0], [0], [1], [0, 0, 1, 1], [], []>} : vector<16x128xbf16>, vector<128x128xbf16>, vector<16x128xf32> -> vector<16x128xf32>
    %c0_9 = arith.constant 0 : index
    %c0_10 = arith.constant 0 : index
    %12 = vector.load %arg5[%c0_9, %c0_10] : memref<1x128xf32, #tpu.memory_space<vmem>>, vector<1x128xf32>
    %13 = vector.broadcast %12 : vector<1x128xf32> to vector<16x128xf32>
    %14 = arith.addf %11, %13 : vector<16x128xf32>
    %cst_11 = arith.constant 0.000000e+00 : f32
    %15 = vector.broadcast %cst_11 : f32 to vector<16x128xf32>
    %16 = arith.maximumf %14, %15 : vector<16x128xf32>
    %17 = arith.truncf %16 : vector<16x128xf32> to vector<16x128xbf16>
    %c0_12 = arith.constant 0 : index
    %c0_13 = arith.constant 0 : index
    %18 = vector.load %arg6[%c0_12, %c0_13] : memref<128x128xbf16, #tpu.memory_space<vmem>>, vector<128x128xbf16>
    %cst_14 = arith.constant dense<0.000000e+00> : vector<16x128xf32>
    %19 = tpu.matmul %17, %18, %cst_14 {dimension_numbers = #tpu.dot_dimension_numbers<[1], [0], [0], [1], [0, 0, 1, 1], [], []>} : vector<16x128xbf16>, vector<128x128xbf16>, vector<16x128xf32> -> vector<16x128xf32>
    %c0_15 = arith.constant 0 : index
    %c0_16 = arith.constant 0 : index
    %20 = vector.load %arg7[%c0_15, %c0_16] : memref<1x128xf32, #tpu.memory_space<vmem>>, vector<1x128xf32>
    %21 = vector.broadcast %20 : vector<1x128xf32> to vector<16x128xf32>
    %22 = arith.addf %19, %21 : vector<16x128xf32>
    %cst_17 = arith.constant 0.000000e+00 : f32
    %23 = vector.broadcast %cst_17 : f32 to vector<16x128xf32>
    %24 = arith.maximumf %22, %23 : vector<16x128xf32>
    %25 = arith.truncf %24 : vector<16x128xf32> to vector<16x128xbf16>
    %c0_18 = arith.constant 0 : index
    %c0_19 = arith.constant 0 : index
    %26 = vector.load %arg8[%c0_18, %c0_19] : memref<128x128xbf16, #tpu.memory_space<vmem>>, vector<128x128xbf16>
    %cst_20 = arith.constant dense<0.000000e+00> : vector<16x128xf32>
    %27 = tpu.matmul %25, %26, %cst_20 {dimension_numbers = #tpu.dot_dimension_numbers<[1], [0], [0], [1], [0, 0, 1, 1], [], []>} : vector<16x128xbf16>, vector<128x128xbf16>, vector<16x128xf32> -> vector<16x128xf32>
    %c0_21 = arith.constant 0 : index
    %c0_22 = arith.constant 0 : index
    %28 = vector.load %arg9[%c0_21, %c0_22] : memref<1x128xf32, #tpu.memory_space<vmem>>, vector<1x128xf32>
    %29 = vector.broadcast %28 : vector<1x128xf32> to vector<16x128xf32>
    %30 = arith.addf %27, %29 : vector<16x128xf32>
    %31 = arith.truncf %30 : vector<16x128xf32> to vector<16x128xbf16>
    %c0_23 = arith.constant 0 : index
    %c0_24 = arith.constant 0 : index
    %32 = vector.load %arg10[%c0_23, %c0_24] : memref<16x128xbf16, #tpu.memory_space<vmem>>, vector<16x128xbf16>
    tpu.vector_store %arg10[%c0_23, %c0_24], %31 {strides = array<i32>} : memref<16x128xbf16, #tpu.memory_space<vmem>>, vector<16x128xbf16>,
    return
  }
  func.func @transform_0(%arg0: i32) -> (i32, i32) {
    %c0_i32 = arith.constant 0 : i32
    %c0_i32_0 = arith.constant 0 : i32
    return %arg0, %c0_i32 : i32, i32
  }
  func.func @transform_1(%arg0: i32) -> (i32, i32) {
    %c0_i32 = arith.constant 0 : i32
    %c0_i32_0 = arith.constant 0 : i32
    %c0_i32_1 = arith.constant 0 : i32
    return %c0_i32, %c0_i32_0 : i32, i32
  }
  func.func @transform_2(%arg0: i32) -> (i32, i32) {
    %c0_i32 = arith.constant 0 : i32
    %c0_i32_0 = arith.constant 0 : i32
    %c0_i32_1 = arith.constant 0 : i32
    return %c0_i32, %c0_i32_0 : i32, i32
  }
  func.func @transform_3(%arg0: i32) -> (i32, i32) {
    %c0_i32 = arith.constant 0 : i32
    %c0_i32_0 = arith.constant 0 : i32
    %c0_i32_1 = arith.constant 0 : i32
    return %c0_i32, %c0_i32_0 : i32, i32
  }
  func.func @transform_4(%arg0: i32) -> (i32, i32) {
    %c0_i32 = arith.constant 0 : i32
    %c0_i32_0 = arith.constant 0 : i32
    %c0_i32_1 = arith.constant 0 : i32
    return %c0_i32, %c0_i32_0 : i32, i32
  }
  func.func @transform_5(%arg0: i32) -> (i32, i32) {
    %c0_i32 = arith.constant 0 : i32
    %c0_i32_0 = arith.constant 0 : i32
    %c0_i32_1 = arith.constant 0 : i32
    return %c0_i32, %c0_i32_0 : i32, i32
  }
  func.func @transform_6(%arg0: i32) -> (i32, i32) {
    %c0_i32 = arith.constant 0 : i32
    %c0_i32_0 = arith.constant 0 : i32
    %c0_i32_1 = arith.constant 0 : i32
    return %c0_i32, %c0_i32_0 : i32, i32
  }
  func.func @transform_7(%arg0: i32) -> (i32, i32) {
    %c0_i32 = arith.constant 0 : i32
    %c0_i32_0 = arith.constant 0 : i32
    %c0_i32_1 = arith.constant 0 : i32
    return %c0_i32, %c0_i32_0 : i32, i32
  }
  func.func @transform_8(%arg0: i32) -> (i32, i32) {
    %c0_i32 = arith.constant 0 : i32
    %c0_i32_0 = arith.constant 0 : i32
    %c0_i32_1 = arith.constant 0 : i32
    return %c0_i32, %c0_i32_0 : i32, i32
  }
  func.func @transform_9(%arg0: i32) -> (i32, i32) {
    %c0_i32 = arith.constant 0 : i32
    %c0_i32_0 = arith.constant 0 : i32
    return %arg0, %c0_i32 : i32, i32
  }
}

</mosaic_0001>

<llo_original>
// kernel: tpu_custom_call.1
$region0: #{tpu_custom_call.1}
  #allocation0 [shape = 'u32[]', space=smem, size = 0x4, offset = 0x4, fixed_abs, tag = 'smem constant byte address 0x4 - core index']
  #allocation1 [shape = 'u32[72,128]{1,0:T(1,128)}', space=vmem, size = 0x9000, scoped, tag = 'internal scratch']
  %s0 = inlined_call_operand.hbm [shape: f32[16,1024], index: 0, kind: input, shape index: {}]
  %s1 = inlined_call_operand.hbm [shape: bf16[1024,128], index: 1, kind: input, shape index: {}]
  %s2 = inlined_call_operand.vmem [shape: f32[1,128], index: 2, kind: input, shape index: {}]
  %s3 = inlined_call_operand.hbm [shape: bf16[128,128], index: 3, kind: input, shape index: {}]
  %s4 = inlined_call_operand.vmem [shape: f32[1,128], index: 4, kind: input, shape index: {}]
  %s5 = inlined_call_operand.hbm [shape: bf16[128,128], index: 5, kind: input, shape index: {}]
  %s6 = inlined_call_operand.vmem [shape: f32[1,128], index: 6, kind: input, shape index: {}]
  %s7 = inlined_call_operand.hbm [shape: bf16[128,128], index: 7, kind: input, shape index: {}]
  %s8 = inlined_call_operand.vmem [shape: f32[1,128], index: 8, kind: input, shape index: {}]
  %s9 = inlined_call_operand.hbm [shape: bf16[16,128], index: 9, kind: output, shape index: {}]
  %s10 = sld [smem:[#allocation0]]
  $region66: #{tpu_custom_call.1} parent=0
    _
  %s12 = ssub.s32 1, %s10
  %s13 = scalar_select 0, %s12, %s10
  $region1: #{tpu_custom_call.1} parent=0
    #allocation2 [shape = 'u8[65536]{0}', space=vmem, size = 0x10000, scoped, tag = 'input window, operand 0, single buffered']
    #allocation3 [shape = 's32[1]{0}', space=sflag, size = 0x4, scoped, tag = 'scoped memory for tpu_custom_call.1']
    #allocation4 [shape = 's32[1]{0}', space=sflag, size = 0x4, scoped, tag = 'scoped memory for tpu_custom_call.1']
    #allocation5 [shape = 'u8[262144]{0}', space=vmem, size = 0x40000, scoped, tag = 'input window, operand 1, single buffered']
    #allocation6 [shape = 's32[1]{0}', space=sflag, size = 0x4, scoped, tag = 'scoped memory for tpu_custom_call.1']
    #allocation7 [shape = 'u8[32768]{0}', space=vmem, size = 0x8000, scoped, tag = 'input window, operand 3, single buffered']
    #allocation8 [shape = 'u8[32768]{0}', space=vmem, size = 0x8000, scoped, tag = 'input window, operand 5, single buffered']
    #allocation9 [shape = 's32[1]{0}', space=sflag, size = 0x4, scoped, tag = 'scoped memory for tpu_custom_call.1']
    #allocation10 [shape = 'u8[32768]{0}', space=vmem, size = 0x8000, scoped, tag = 'input window, operand 7, single buffered']
    #allocation11 [shape = 'u8[4096]{0}', space=vmem, size = 0x1000, scoped, tag = 'output window, operand 0, single buffered']
    %14 = vsyncpa [#allocation3], 0
    %15 = vsyncpa [#allocation6], 0
    %16 = vsyncpa [#allocation9], 0
    %17 = vsyncpa [#allocation4], 0
    // Predicated region
    $region2: #{tpu_custom_call.1} parent=1 // pred_check
      _
    $region3: #{tpu_custom_call.1} parent=1 // pred_check_branch
      %19 = sbr.rel (0) target = $region5
    $region4: #{tpu_custom_call.1} parent=1 // pred_region
      %21 = vsyncadd [#allocation3], 0
      %s22 = sshll.u32 %s0, 4
      %s23 = int_to_ptr.hbm [resolvable:$true] %s22
      %s24 = sshll.u32 [#allocation2], 4
      %s25 = int_to_ptr.vmem [resolvable:$true] %s24
      %30 = dma.hbm_to_vmem [thread:$0]  %s23, 2048, %s25, [#allocation3], 1024, 1024, 64
    $region5: #{tpu_custom_call.1} parent=1 // pred_fallthru
      _
    // Predicated region
    $region6: #{tpu_custom_call.1} parent=1 // pred_check
      _
    $region7: #{tpu_custom_call.1} parent=1 // pred_check_branch
      %32 = sbr.rel (0) target = $region9
    $region8: #{tpu_custom_call.1} parent=1 // pred_region
      %34 = vsyncadd [#allocation6], 0
      %s35 = sshll.u32 %s1, 4
      %s36 = int_to_ptr.hbm [resolvable:$true] %s35
      %s37 = sshll.u32 [#allocation5], 4
      %s38 = int_to_ptr.vmem [resolvable:$true] %s37
      %43 = dma.hbm_to_vmem [thread:$0]  %s36, 8192, %s38, [#allocation6], 64, 64, 4
    $region9: #{tpu_custom_call.1} parent=1 // pred_fallthru
      _
    // Predicated region
    $region10: #{tpu_custom_call.1} parent=1 // pred_check
      _
    $region11: #{tpu_custom_call.1} parent=1 // pred_check_branch
      %45 = sbr.rel (0) target = $region13
    $region12: #{tpu_custom_call.1} parent=1 // pred_region
      _
    $region13: #{tpu_custom_call.1} parent=1 // pred_fallthru
      _
    // Predicated region
    $region14: #{tpu_custom_call.1} parent=1 // pred_check
      _
    $region15: #{tpu_custom_call.1} parent=1 // pred_check_branch
      %47 = sbr.rel (0) target = $region17
    $region16: #{tpu_custom_call.1} parent=1 // pred_region
      %49 = vsyncadd [#allocation6], 0
      %s50 = sshll.u32 %s3, 4
      %s51 = int_to_ptr.hbm [resolvable:$true] %s50
      %s52 = sshll.u32 [#allocation7], 4
      %s53 = int_to_ptr.vmem [resolvable:$true] %s52
      %58 = dma.hbm_to_vmem [thread:$0]  %s51, 1024, %s53, [#allocation6], 64, 64, 4
    $region17: #{tpu_custom_call.1} parent=1 // pred_fallthru
      _
    // Predicated region
    $region18: #{tpu_custom_call.1} parent=1 // pred_check
      _
    $region19: #{tpu_custom_call.1} parent=1 // pred_check_branch
      %60 = sbr.rel (0) target = $region21
    $region20: #{tpu_custom_call.1} parent=1 // pred_region
      _
    $region21: #{tpu_custom_call.1} parent=1 // pred_fallthru
      _
    // Predicated region
    $region22: #{tpu_custom_call.1} parent=1 // pred_check
      _
    $region23: #{tpu_custom_call.1} parent=1 // pred_check_branch
      %62 = sbr.rel (0) target = $region25
    $region24: #{tpu_custom_call.1} parent=1 // pred_region
      %64 = vsyncadd [#allocation9], 0
      %s65 = sshll.u32 %s5, 4
      %s66 = int_to_ptr.hbm [resolvable:$true] %s65
      %s67 = sshll.u32 [#allocation8], 4
      %s68 = int_to_ptr.vmem [resolvable:$true] %s67
      %73 = dma.hbm_to_vmem [thread:$0]  %s66, 1024, %s68, [#allocation9], 64, 64, 4
    $region25: #{tpu_custom_call.1} parent=1 // pred_fallthru
      _
    // Predicated region
    $region26: #{tpu_custom_call.1} parent=1 // pred_check
      _
    $region27: #{tpu_custom_call.1} parent=1 // pred_check_branch
      %75 = sbr.rel (0) target = $region29
    $region28: #{tpu_custom_call.1} parent=1 // pred_region
      _
    $region29: #{tpu_custom_call.1} parent=1 // pred_fallthru
      _
    // Predicated region
    $region30: #{tpu_custom_call.1} parent=1 // pred_check
      _
    $region31: #{tpu_custom_call.1} parent=1 // pred_check_branch
      %77 = sbr.rel (0) target = $region33
    $region32: #{tpu_custom_call.1} parent=1 // pred_region
      %79 = vsyncadd [#allocation9], 0
      %s80 = sshll.u32 %s7, 4
      %s81 = int_to_ptr.hbm [resolvable:$true] %s80
      %s82 = sshll.u32 [#allocation10], 4
      %s83 = int_to_ptr.vmem [resolvable:$true] %s82
      %88 = dma.hbm_to_vmem [thread:$0]  %s81, 1024, %s83, [#allocation9], 64, 64, 4
    $region33: #{tpu_custom_call.1} parent=1 // pred_fallthru
      _
    // Predicated region
    $region34: #{tpu_custom_call.1} parent=1 // pred_check
      _
    $region35: #{tpu_custom_call.1} parent=1 // pred_check_branch
      %90 = sbr.rel (0) target = $region37
    $region36: #{tpu_custom_call.1} parent=1 // pred_region
      _
    $region37: #{tpu_custom_call.1} parent=1 // pred_fallthru
      _
    // Predicated region
    $region38: #{tpu_custom_call.1} parent=1 // pred_check
      _
    $region39: #{tpu_custom_call.1} parent=1 // pred_check_branch
      %92 = sbr.rel (0) target = $region41
    $region40: #{tpu_custom_call.1} parent=1 // pred_region
      %94 = dma.done [#allocation3], 2048
    $region41: #{tpu_custom_call.1} parent=1 // pred_fallthru
      _
    // Predicated region
    $region42: #{tpu_custom_call.1} parent=1 // pred_check
      _
    $region43: #{tpu_custom_call.1} parent=1 // pred_check_branch
      %96 = sbr.rel (0) target = $region45
    $region44: #{tpu_custom_call.1} parent=1 // pred_region
      %98 = dma.done [#allocation6], 8192
    $region45: #{tpu_custom_call.1} parent=1 // pred_fallthru
      _
    // Predicated region
    $region46: #{tpu_custom_call.1} parent=1 // pred_check
      _
    $region47: #{tpu_custom_call.1} parent=1 // pred_check_branch
      %100 = sbr.rel (0) target = $region49
    $region48: #{tpu_custom_call.1} parent=1 // pred_region
      %102 = dma.done [#allocation6], 1024
    $region49: #{tpu_custom_call.1} parent=1 // pred_fallthru
      _
    // Predicated region
    $region50: #{tpu_custom_call.1} parent=1 // pred_check
      _
    $region51: #{tpu_custom_call.1} parent=1 // pred_check_branch
      %104 = sbr.rel (0) target = $region53
    $region52: #{tpu_custom_call.1} parent=1 // pred_region
      %106 = dma.done [#allocation9], 1024
    $region53: #{tpu_custom_call.1} parent=1 // pred_fallthru
      _
    // Predicated region
    $region54: #{tpu_custom_call.1} parent=1 // pred_check
      _
    $region55: #{tpu_custom_call.1} parent=1 // pred_check_branch
      %108 = sbr.rel (0) target = $region57
    $region56: #{tpu_custom_call.1} parent=1 // pred_region
      %110 = dma.done [#allocation9], 1024
    $region57: #{tpu_custom_call.1} parent=1 // pred_fallthru
      _
    %v111 = vld [vmem:[#allocation2] sm:$0xff]
    %v112 = vld [vmem:[#allocation2 + $0x8] sm:$0xff]
    %v113 = vld [vmem:[#allocation2 + $0x10] sm:$0xff]
    %v114 = vld [vmem:[#allocation2 + $0x18] sm:$0xff]
    %v115 = vld [vmem:[#allocation2 + $0x20] sm:$0xff]
    %v116 = vld [vmem:[#allocation2 + $0x28] sm:$0xff]
    %v117 = vld [vmem:[#allocation2 + $0x30] sm:$0xff]
    %v118 = vld [vmem:[#allocation2 + $0x38] sm:$0xff]
    %v119 = vld [vmem:[#allocation2 + $0x40] sm:$0xff]
    %v120 = vld [vmem:[#allocation2 + $0x48] sm:$0xff]
    %v121 = vld [vmem:[#allocation2 + $0x50] sm:$0xff]
    %v122 = vld [vmem:[#allocation2 + $0x58] sm:$0xff]
    %v123 = vld [vmem:[#allocation2 + $0x60] sm:$0xff]
    %v124 = vld [vmem:[#allocation2 + $0x68] sm:$0xff]
    %v125 = vld [vmem:[#allocation2 + $0x70] sm:$0xff]
    %v126 = vld [vmem:[#allocation2 + $0x78] sm:$0xff]
    %v127 = vpack.c.bf16 %v119, %v111
    %v128 = vpack.c.bf16 %v120, %v112
    %v129 = vpack.c.bf16 %v121, %v113
    %v130 = vpack.c.bf16 %v122, %v114
    %v131 = vpack.c.bf16 %v123, %v115
    %v132 = vpack.c.bf16 %v124, %v116
    %v133 = vpack.c.bf16 %v125, %v117
    %v134 = vpack.c.bf16 %v126, %v118
    %v135 = vld [vmem:[#allocation5] sm:$0xf]
    %v136 = vld [vmem:[#allocation5 + $0x4] sm:$0xf]
    %v137 = vld [vmem:[#allocation5 + $0x8] sm:$0xf]
    %v138 = vld [vmem:[#allocation5 + $0xc] sm:$0xf]
    %v139 = vld [vmem:[#allocation5 + $0x10] sm:$0xf]
    %v140 = vld [vmem:[#allocation5 + $0x14] sm:$0xf]
    %v141 = vld [vmem:[#allocation5 + $0x18] sm:$0xf]
    %v142 = vld [vmem:[#allocation5 + $0x1c] sm:$0xf]
    %v143 = vld [vmem:[#allocation5 + $0x20] sm:$0xf]
    %v144 = vld [vmem:[#allocation5 + $0x24] sm:$0xf]
    %v145 = vld [vmem:[#allocation5 + $0x28] sm:$0xf]
    %v146 = vld [vmem:[#allocation5 + $0x2c] sm:$0xf]
    %v147 = vld [vmem:[#allocation5 + $0x30] sm:$0xf]
    %v148 = vld [vmem:[#allocation5 + $0x34] sm:$0xf]
    %v149 = vld [vmem:[#allocation5 + $0x38] sm:$0xf]
    %v150 = vld [vmem:[#allocation5 + $0x3c] sm:$0xf]
    %v151 = vld [vmem:[#allocation5 + $0x40] sm:$0xf]
    %v152 = vld [vmem:[#allocation5 + $0x44] sm:$0xf]
    %v153 = vld [vmem:[#allocation5 + $0x48] sm:$0xf]
    %v154 = vld [vmem:[#allocation5 + $0x4c] sm:$0xf]
    %v155 = vld [vmem:[#allocation5 + $0x50] sm:$0xf]
    %v156 = vld [vmem:[#allocation5 + $0x54] sm:$0xf]
    %v157 = vld [vmem:[#allocation5 + $0x58] sm:$0xf]
    %v158 = vld [vmem:[#allocation5 + $0x5c] sm:$0xf]
    %v159 = vld [vmem:[#allocation5 + $0x60] sm:$0xf]
    %v160 = vld [vmem:[#allocation5 + $0x64] sm:$0xf]
    %v161 = vld [vmem:[#allocation5 + $0x68] sm:$0xf]
    %v162 = vld [vmem:[#allocation5 + $0x6c] sm:$0xf]
    %v163 = vld [vmem:[#allocation5 + $0x70] sm:$0xf]
    %v164 = vld [vmem:[#allocation5 + $0x74] sm:$0xf]
    %v165 = vld [vmem:[#allocation5 + $0x78] sm:$0xf]
    %v166 = vld [vmem:[#allocation5 + $0x7c] sm:$0xf]
    %v167 = vld [vmem:[#allocation5 + $0x80] sm:$0xf]
    %v168 = vld [vmem:[#allocation5 + $0x84] sm:$0xf]
    %v169 = vld [vmem:[#allocation5 + $0x88] sm:$0xf]
    %v170 = vld [vmem:[#allocation5 + $0x8c] sm:$0xf]
    %v171 = vld [vmem:[#allocation5 + $0x90] sm:$0xf]
    %v172 = vld [vmem:[#allocation5 + $0x94] sm:$0xf]
    %v173 = vld [vmem:[#allocation5 + $0x98] sm:$0xf]
    %v174 = vld [vmem:[#allocation5 + $0x9c] sm:$0xf]
    %v175 = vld [vmem:[#allocation5 + $0xa0] sm:$0xf]
    %v176 = vld [vmem:[#allocation5 + $0xa4] sm:$0xf]
    %v177 = vld [vmem:[#allocation5 + $0xa8] sm:$0xf]
    %v178 = vld [vmem:[#allocation5 + $0xac] sm:$0xf]
    %v179 = vld [vmem:[#allocation5 + $0xb0] sm:$0xf]
    %v180 = vld [vmem:[#allocation5 + $0xb4] sm:$0xf]
    %v181 = vld [vmem:[#allocation5 + $0xb8] sm:$0xf]
    %v182 = vld [vmem:[#allocation5 + $0xbc] sm:$0xf]
    %v183 = vld [vmem:[#allocation5 + $0xc0] sm:$0xf]
    %v184 = vld [vmem:[#allocation5 + $0xc4] sm:$0xf]
    %v185 = vld [vmem:[#allocation5 + $0xc8] sm:$0xf]
    %v186 = vld [vmem:[#allocation5 + $0xcc] sm:$0xf]
    %v187 = vld [vmem:[#allocation5 + $0xd0] sm:$0xf]
    %v188 = vld [vmem:[#allocation5 + $0xd4] sm:$0xf]
    %v189 = vld [vmem:[#allocation5 + $0xd8] sm:$0xf]
    %v190 = vld [vmem:[#allocation5 + $0xdc] sm:$0xf]
    %v191 = vld [vmem:[#allocation5 + $0xe0] sm:$0xf]
    %v192 = vld [vmem:[#allocation5 + $0xe4] sm:$0xf]
    %v193 = vld [vmem:[#allocation5 + $0xe8] sm:$0xf]
    %v194 = vld [vmem:[#allocation5 + $0xec] sm:$0xf]
    %v195 = vld [vmem:[#allocation5 + $0xf0] sm:$0xf]
    %v196 = vld [vmem:[#allocation5 + $0xf4] sm:$0xf]
    %v197 = vld [vmem:[#allocation5 + $0xf8] sm:$0xf]
    %v198 = vld [vmem:[#allocation5 + $0xfc] sm:$0xf]
    %v199 = vld [vmem:[#allocation5 + $0x100] sm:$0xf]
    %v200 = vld [vmem:[#allocation5 + $0x104] sm:$0xf]
    %v201 = vld [vmem:[#allocation5 + $0x108] sm:$0xf]
    %v202 = vld [vmem:[#allocation5 + $0x10c] sm:$0xf]
    %v203 = vld [vmem:[#allocation5 + $0x110] sm:$0xf]
    %v204 = vld [vmem:[#allocation5 + $0x114] sm:$0xf]
    %v205 = vld [vmem:[#allocation5 + $0x118] sm:$0xf]
    %v206 = vld [vmem:[#allocation5 + $0x11c] sm:$0xf]
    %v207 = vld [vmem:[#allocation5 + $0x120] sm:$0xf]
    %v208 = vld [vmem:[#allocation5 + $0x124] sm:$0xf]
    %v209 = vld [vmem:[#allocation5 + $0x128] sm:$0xf]
    %v210 = vld [vmem:[#allocation5 + $0x12c] sm:$0xf]
    %v211 = vld [vmem:[#allocation5 + $0x130] sm:$0xf]
    %v212 = vld [vmem:[#allocation5 + $0x134] sm:$0xf]
    %v213 = vld [vmem:[#allocation5 + $0x138] sm:$0xf]
    %v214 = vld [vmem:[#allocation5 + $0x13c] sm:$0xf]
    %v215 = vld [vmem:[#allocation5 + $0x140] sm:$0xf]
    %v216 = vld [vmem:[#allocation5 + $0x144] sm:$0xf]
    %v217 = vld [vmem:[#allocation5 + $0x148] sm:$0xf]
    %v218 = vld [vmem:[#allocation5 + $0x14c] sm:$0xf]
    %v219 = vld [vmem:[#allocation5 + $0x150] sm:$0xf]
    %v220 = vld [vmem:[#allocation5 + $0x154] sm:$0xf]
    %v221 = vld [vmem:[#allocation5 + $0x158] sm:$0xf]
    %v222 = vld [vmem:[#allocation5 + $0x15c] sm:$0xf]
    %v223 = vld [vmem:[#allocation5 + $0x160] sm:$0xf]
    %v224 = vld [vmem:[#allocation5 + $0x164] sm:$0xf]
    %v225 = vld [vmem:[#allocation5 + $0x168] sm:$0xf]
    %v226 = vld [vmem:[#allocation5 + $0x16c] sm:$0xf]
    %v227 = vld [vmem:[#allocation5 + $0x170] sm:$0xf]
    %v228 = vld [vmem:[#allocation5 + $0x174] sm:$0xf]
    %v229 = vld [vmem:[#allocation5 + $0x178] sm:$0xf]
    %v230 = vld [vmem:[#allocation5 + $0x17c] sm:$0xf]
    %v231 = vld [vmem:[#allocation5 + $0x180] sm:$0xf]
    %v232 = vld [vmem:[#allocation5 + $0x184] sm:$0xf]
    %v233 = vld [vmem:[#allocation5 + $0x188] sm:$0xf]
    %v234 = vld [vmem:[#allocation5 + $0x18c] sm:$0xf]
    %v235 = vld [vmem:[#allocation5 + $0x190] sm:$0xf]
    %v236 = vld [vmem:[#allocation5 + $0x194] sm:$0xf]
    %v237 = vld [vmem:[#allocation5 + $0x198] sm:$0xf]
    %v238 = vld [vmem:[#allocation5 + $0x19c] sm:$0xf]
    %v239 = vld [vmem:[#allocation5 + $0x1a0] sm:$0xf]
    %v240 = vld [vmem:[#allocation5 + $0x1a4] sm:$0xf]
    %v241 = vld [vmem:[#allocation5 + $0x1a8] sm:$0xf]
    %v242 = vld [vmem:[#allocation5 + $0x1ac] sm:$0xf]
    %v243 = vld [vmem:[#allocation5 + $0x1b0] sm:$0xf]
    %v244 = vld [vmem:[#allocation5 + $0x1b4] sm:$0xf]
    %v245 = vld [vmem:[#allocation5 + $0x1b8] sm:$0xf]
    %v246 = vld [vmem:[#allocation5 + $0x1bc] sm:$0xf]
    %v247 = vld [vmem:[#allocation5 + $0x1c0] sm:$0xf]
    %v248 = vld [vmem:[#allocation5 + $0x1c4] sm:$0xf]
    %v249 = vld [vmem:[#allocation5 + $0x1c8] sm:$0xf]
    %v250 = vld [vmem:[#allocation5 + $0x1cc] sm:$0xf]
    %v251 = vld [vmem:[#allocation5 + $0x1d0] sm:$0xf]
    %v252 = vld [vmem:[#allocation5 + $0x1d4] sm:$0xf]
    %v253 = vld [vmem:[#allocation5 + $0x1d8] sm:$0xf]
    %v254 = vld [vmem:[#allocation5 + $0x1dc] sm:$0xf]
    %v255 = vld [vmem:[#allocation5 + $0x1e0] sm:$0xf]
    %v256 = vld [vmem:[#allocation5 + $0x1e4] sm:$0xf]
    %v257 = vld [vmem:[#allocation5 + $0x1e8] sm:$0xf]
    %v258 = vld [vmem:[#allocation5 + $0x1ec] sm:$0xf]
    %v259 = vld [vmem:[#allocation5 + $0x1f0] sm:$0xf]
    %v260 = vld [vmem:[#allocation5 + $0x1f4] sm:$0xf]
    %v261 = vld [vmem:[#allocation5 + $0x1f8] sm:$0xf]
    %v262 = vld [vmem:[#allocation5 + $0x1fc] sm:$0xf]
    %v263 = vld [vmem:[%s2] sm:$0x1]
    %v265 = vperm.slane %v263, 0
    %v395 = vunpack.c.l.b16 %v135
    %v396 = vunpack.c.l.b16 %v136
    %v397 = vunpack.c.l.b16 %v137
    %v398 = vunpack.c.l.b16 %v138
    %v399 = vunpack.c.l.b16 %v139
    %v400 = vunpack.c.l.b16 %v140
    %v401 = vunpack.c.l.b16 %v141
    %v402 = vunpack.c.l.b16 %v142
    %v403 = vunpack.c.l.b16 %v143
    %v404 = vunpack.c.l.b16 %v144
    %v405 = vunpack.c.l.b16 %v145
    %v406 = vunpack.c.l.b16 %v146
    %v407 = vunpack.c.l.b16 %v147
    %v408 = vunpack.c.l.b16 %v148
    %v409 = vunpack.c.l.b16 %v149
    %v410 = vunpack.c.l.b16 %v150
    %v411 = vunpack.c.l.b16 %v151
    %v412 = vunpack.c.l.b16 %v152
    %v413 = vunpack.c.l.b16 %v153
    %v414 = vunpack.c.l.b16 %v154
    %v415 = vunpack.c.l.b16 %v155
    %v416 = vunpack.c.l.b16 %v156
    %v417 = vunpack.c.l.b16 %v157
    %v418 = vunpack.c.l.b16 %v158
    %v419 = vunpack.c.l.b16 %v159
    %v420 = vunpack.c.l.b16 %v160
    %v421 = vunpack.c.l.b16 %v161
    %v422 = vunpack.c.l.b16 %v162
    %v423 = vunpack.c.l.b16 %v163
    %v424 = vunpack.c.l.b16 %v164
    %v425 = vunpack.c.l.b16 %v165
    %v426 = vunpack.c.l.b16 %v166
    %v427 = vunpack.c.l.b16 %v167
    %v428 = vunpack.c.l.b16 %v168
    %v429 = vunpack.c.l.b16 %v169
    %v430 = vunpack.c.l.b16 %v170
    %v431 = vunpack.c.l.b16 %v171
    %v432 = vunpack.c.l.b16 %v172
    %v433 = vunpack.c.l.b16 %v173
    %v434 = vunpack.c.l.b16 %v174
    %v435 = vunpack.c.l.b16 %v175
    %v436 = vunpack.c.l.b16 %v176
    %v437 = vunpack.c.l.b16 %v177
    %v438 = vunpack.c.l.b16 %v178
    %v439 = vunpack.c.l.b16 %v179
    %v440 = vunpack.c.l.b16 %v180
    %v441 = vunpack.c.l.b16 %v181
    %v442 = vunpack.c.l.b16 %v182
    %v443 = vunpack.c.l.b16 %v183
    %v444 = vunpack.c.l.b16 %v184
    %v445 = vunpack.c.l.b16 %v185
    %v446 = vunpack.c.l.b16 %v186
    %v447 = vunpack.c.l.b16 %v187
    %v448 = vunpack.c.l.b16 %v188
    %v449 = vunpack.c.l.b16 %v189
    %v450 = vunpack.c.l.b16 %v190
    %v451 = vunpack.c.l.b16 %v191
    %v452 = vunpack.c.l.b16 %v192
    %v453 = vunpack.c.l.b16 %v193
    %v454 = vunpack.c.l.b16 %v194
    %v455 = vunpack.c.l.b16 %v195
    %v456 = vunpack.c.l.b16 %v196
    %v457 = vunpack.c.l.b16 %v197
    %v458 = vunpack.c.l.b16 %v198
    %v459 = vunpack.c.l.b16 %v199
    %v460 = vunpack.c.l.b16 %v200
    %v461 = vunpack.c.l.b16 %v201
    %v462 = vunpack.c.l.b16 %v202
    %v463 = vunpack.c.l.b16 %v203
    %v464 = vunpack.c.l.b16 %v204
    %v465 = vunpack.c.l.b16 %v205
    %v466 = vunpack.c.l.b16 %v206
    %v467 = vunpack.c.l.b16 %v207
    %v468 = vunpack.c.l.b16 %v208
    %v469 = vunpack.c.l.b16 %v209
    %v470 = vunpack.c.l.b16 %v210
    %v471 = vunpack.c.l.b16 %v211
    %v472 = vunpack.c.l.b16 %v212
    %v473 = vunpack.c.l.b16 %v213
    %v474 = vunpack.c.l.b16 %v214
    %v475 = vunpack.c.l.b16 %v215
    %v476 = vunpack.c.l.b16 %v216
    %v477 = vunpack.c.l.b16 %v217
    %v478 = vunpack.c.l.b16 %v218
    %v479 = vunpack.c.l.b16 %v219
    %v480 = vunpack.c.l.b16 %v220
    %v481 = vunpack.c.l.b16 %v221
    %v482 = vunpack.c.l.b16 %v222
    %v483 = vunpack.c.l.b16 %v223
    %v484 = vunpack.c.l.b16 %v224
    %v485 = vunpack.c.l.b16 %v225
    %v486 = vunpack.c.l.b16 %v226
    %v487 = vunpack.c.l.b16 %v227
    %v488 = vunpack.c.l.b16 %v228
    %v489 = vunpack.c.l.b16 %v229
    %v490 = vunpack.c.l.b16 %v230
    %v491 = vunpack.c.l.b16 %v231
    %v492 = vunpack.c.l.b16 %v232
    %v493 = vunpack.c.l.b16 %v233
    %v494 = vunpack.c.l.b16 %v234
    %v495 = vunpack.c.l.b16 %v235
    %v496 = vunpack.c.l.b16 %v236
    %v497 = vunpack.c.l.b16 %v237
    %v498 = vunpack.c.l.b16 %v238
    %v499 = vunpack.c.l.b16 %v239
    %v500 = vunpack.c.l.b16 %v240
    %v501 = vunpack.c.l.b16 %v241
    %v502 = vunpack.c.l.b16 %v242
    %v503 = vunpack.c.l.b16 %v243
    %v504 = vunpack.c.l.b16 %v244
    %v505 = vunpack.c.l.b16 %v245
    %v506 = vunpack.c.l.b16 %v246
    %v507 = vunpack.c.l.b16 %v247
    %v508 = vunpack.c.l.b16 %v248
    %v509 = vunpack.c.l.b16 %v249
    %v510 = vunpack.c.l.b16 %v250
    %v511 = vunpack.c.l.b16 %v251
    %v512 = vunpack.c.l.b16 %v252
    %v513 = vunpack.c.l.b16 %v253
    %v514 = vunpack.c.l.b16 %v254
    %v515 = vunpack.c.l.b16 %v255
    %v516 = vunpack.c.l.b16 %v256
    %v517 = vunpack.c.l.b16 %v257
    %v518 = vunpack.c.l.b16 %v258
    %v519 = vunpack.c.l.b16 %v259
    %v520 = vunpack.c.l.b16 %v260
    %v521 = vunpack.c.l.b16 %v261
    %v522 = vunpack.c.l.b16 %v262
    %v523 = vpack.c.b16 %v396, %v395
    %v524 = vpack.c.b16 %v398, %v397
    %v525 = vpack.c.b16 %v400, %v399
    %v526 = vpack.c.b16 %v402, %v401
    %v527 = vpack.c.b16 %v404, %v403
    %v528 = vpack.c.b16 %v406, %v405
    %v529 = vpack.c.b16 %v408, %v407
    %v530 = vpack.c.b16 %v410, %v409
    %v531 = vpack.c.b16 %v412, %v411
    %v532 = vpack.c.b16 %v414, %v413
    %v533 = vpack.c.b16 %v416, %v415
    %v534 = vpack.c.b16 %v418, %v417
    %v535 = vpack.c.b16 %v420, %v419
    %v536 = vpack.c.b16 %v422, %v421
    %v537 = vpack.c.b16 %v424, %v423
    %v538 = vpack.c.b16 %v426, %v425
    %v539 = vpack.c.b16 %v428, %v427
    %v540 = vpack.c.b16 %v430, %v429
    %v541 = vpack.c.b16 %v432, %v431
    %v542 = vpack.c.b16 %v434, %v433
    %v543 = vpack.c.b16 %v436, %v435
    %v544 = vpack.c.b16 %v438, %v437
    %v545 = vpack.c.b16 %v440, %v439
    %v546 = vpack.c.b16 %v442, %v441
    %v547 = vpack.c.b16 %v444, %v443
    %v548 = vpack.c.b16 %v446, %v445
    %v549 = vpack.c.b16 %v448, %v447
    %v550 = vpack.c.b16 %v450, %v449
    %v551 = vpack.c.b16 %v452, %v451
    %v552 = vpack.c.b16 %v454, %v453
    %v553 = vpack.c.b16 %v456, %v455
    %v554 = vpack.c.b16 %v458, %v457
    %v555 = vpack.c.b16 %v460, %v459
    %v556 = vpack.c.b16 %v462, %v461
    %v557 = vpack.c.b16 %v464, %v463
    %v558 = vpack.c.b16 %v466, %v465
    %v559 = vpack.c.b16 %v468, %v467
    %v560 = vpack.c.b16 %v470, %v469
    %v561 = vpack.c.b16 %v472, %v471
    %v562 = vpack.c.b16 %v474, %v473
    %v563 = vpack.c.b16 %v476, %v475
    %v564 = vpack.c.b16 %v478, %v477
    %v565 = vpack.c.b16 %v480, %v479
    %v566 = vpack.c.b16 %v482, %v481
    %v567 = vpack.c.b16 %v484, %v483
    %v568 = vpack.c.b16 %v486, %v485
    %v569 = vpack.c.b16 %v488, %v487
    %v570 = vpack.c.b16 %v490, %v489
    %v571 = vpack.c.b16 %v492, %v491
    %v572 = vpack.c.b16 %v494, %v493
    %v573 = vpack.c.b16 %v496, %v495
    %v574 = vpack.c.b16 %v498, %v497
    %v575 = vpack.c.b16 %v500, %v499
    %v576 = vpack.c.b16 %v502, %v501
    %v577 = vpack.c.b16 %v504, %v503
    %v578 = vpack.c.b16 %v506, %v505
    %v579 = vpack.c.b16 %v508, %v507
    %v580 = vpack.c.b16 %v510, %v509
    %v581 = vpack.c.b16 %v512, %v511
    %v582 = vpack.c.b16 %v514, %v513
    %v583 = vpack.c.b16 %v516, %v515
    %v584 = vpack.c.b16 %v518, %v517
    %v585 = vpack.c.b16 %v520, %v519
    %v586 = vpack.c.b16 %v522, %v521
    %651 = vmatpush.bf16.msra.mxu0 %v530
    %652 = vmatpush.bf16.msra.mxu0 %v529
    %653 = vmatpush.bf16.msra.mxu0 %v528
    %654 = vmatpush.bf16.msra.mxu0 %v527
    %655 = vmatpush.bf16.msra.mxu0 %v526
    %656 = vmatpush.bf16.msra.mxu0 %v525
    %657 = vmatpush.bf16.msra.mxu0 %v524
    %658 = vmatpush.bf16.msra.mxu0 %v523
    %659 = vmatmul.bf16.gmra.mxu0 %v127
    %v660 = vpop.f32.mrf.mxu0
    %v661 = vadd.f32 %v265, %v660
    %v662 = vpop.f32.mrf.mxu0
    %v663 = vadd.f32 %v265, %v662
    %664 = vdwg.mxu0
    %665 = vmatpush.bf16.msra.mxu0 %v538
    %666 = vmatpush.bf16.msra.mxu0 %v537
    %667 = vmatpush.bf16.msra.mxu0 %v536
    %668 = vmatpush.bf16.msra.mxu0 %v535
    %669 = vmatpush.bf16.msra.mxu0 %v534
    %670 = vmatpush.bf16.msra.mxu0 %v533
    %671 = vmatpush.bf16.msra.mxu0 %v532
    %672 = vmatpush.bf16.msra.mxu0 %v531
    %673 = vmatmul.bf16.gmra.mxu0 %v128
    %v674 = vpop.f32.mrf.mxu0
    %v675 = vadd.f32 %v661, %v674
    %v676 = vpop.f32.mrf.mxu0
    %v677 = vadd.f32 %v663, %v676
    %678 = vdwg.mxu0
    %679 = vmatpush.bf16.msra.mxu0 %v546
    %680 = vmatpush.bf16.msra.mxu0 %v545
    %681 = vmatpush.bf16.msra.mxu0 %v544
    %682 = vmatpush.bf16.msra.mxu0 %v543
    %683 = vmatpush.bf16.msra.mxu0 %v542
    %684 = vmatpush.bf16.msra.mxu0 %v541
    %685 = vmatpush.bf16.msra.mxu0 %v540
    %686 = vmatpush.bf16.msra.mxu0 %v539
    %687 = vmatmul.bf16.gmra.mxu0 %v129
    %v688 = vpop.f32.mrf.mxu0
    %v689 = vadd.f32 %v675, %v688
    %v690 = vpop.f32.mrf.mxu0
    %v691 = vadd.f32 %v677, %v690
    %692 = vdwg.mxu0
    %693 = vmatpush.bf16.msra.mxu0 %v554
    %694 = vmatpush.bf16.msra.mxu0 %v553
    %695 = vmatpush.bf16.msra.mxu0 %v552
    %696 = vmatpush.bf16.msra.mxu0 %v551
    %697 = vmatpush.bf16.msra.mxu0 %v550
    %698 = vmatpush.bf16.msra.mxu0 %v549
    %699 = vmatpush.bf16.msra.mxu0 %v548
    %700 = vmatpush.bf16.msra.mxu0 %v547
    %701 = vmatmul.bf16.gmra.mxu0 %v130
    %v702 = vpop.f32.mrf.mxu0
    %v703 = vadd.f32 %v689, %v702
    %v704 = vpop.f32.mrf.mxu0
    %v705 = vadd.f32 %v691, %v704
    %706 = vdwg.mxu0
    %707 = vmatpush.bf16.msra.mxu0 %v562
    %708 = vmatpush.bf16.msra.mxu0 %v561
    %709 = vmatpush.bf16.msra.mxu0 %v560
    %710 = vmatpush.bf16.msra.mxu0 %v559
    %711 = vmatpush.bf16.msra.mxu0 %v558
    %712 = vmatpush.bf16.msra.mxu0 %v557
    %713 = vmatpush.bf16.msra.mxu0 %v556
    %714 = vmatpush.bf16.msra.mxu0 %v555
    %715 = vmatmul.bf16.gmra.mxu0 %v131
    %v716 = vpop.f32.mrf.mxu0
    %v717 = vadd.f32 %v703, %v716
    %v718 = vpop.f32.mrf.mxu0
    %v719 = vadd.f32 %v705, %v718
    %720 = vdwg.mxu0
    %721 = vmatpush.bf16.msra.mxu0 %v570
    %722 = vmatpush.bf16.msra.mxu0 %v569
    %723 = vmatpush.bf16.msra.mxu0 %v568
    %724 = vmatpush.bf16.msra.mxu0 %v567
    %725 = vmatpush.bf16.msra.mxu0 %v566
    %726 = vmatpush.bf16.msra.mxu0 %v565
    %727 = vmatpush.bf16.msra.mxu0 %v564
    %728 = vmatpush.bf16.msra.mxu0 %v563
    %729 = vmatmul.bf16.gmra.mxu0 %v132
    %v730 = vpop.f32.mrf.mxu0
    %v731 = vadd.f32 %v717, %v730
    %v732 = vpop.f32.mrf.mxu0
    %v733 = vadd.f32 %v719, %v732
    %734 = vdwg.mxu0
    %735 = vmatpush.bf16.msra.mxu0 %v578
    %736 = vmatpush.bf16.msra.mxu0 %v577
    %737 = vmatpush.bf16.msra.mxu0 %v576
    %738 = vmatpush.bf16.msra.mxu0 %v575
    %739 = vmatpush.bf16.msra.mxu0 %v574
    %740 = vmatpush.bf16.msra.mxu0 %v573
    %741 = vmatpush.bf16.msra.mxu0 %v572
    %742 = vmatpush.bf16.msra.mxu0 %v571
    %743 = vmatmul.bf16.gmra.mxu0 %v133
    %v744 = vpop.f32.mrf.mxu0
    %v745 = vadd.f32 %v731, %v744
    %v746 = vpop.f32.mrf.mxu0
    %v747 = vadd.f32 %v733, %v746
    %748 = vdwg.mxu0
    %749 = vmatpush.bf16.msra.mxu0 %v586
    %750 = vmatpush.bf16.msra.mxu0 %v585
    %751 = vmatpush.bf16.msra.mxu0 %v584
    %752 = vmatpush.bf16.msra.mxu0 %v583
    %753 = vmatpush.bf16.msra.mxu0 %v582
    %754 = vmatpush.bf16.msra.mxu0 %v581
    %755 = vmatpush.bf16.msra.mxu0 %v580
    %756 = vmatpush.bf16.msra.mxu0 %v579
    %757 = vmatmul.bf16.gmra.mxu0 %v134
    %v758 = vpop.f32.mrf.mxu0
    %v759 = vadd.f32 %v745, %v758
    %v760 = vpop.f32.mrf.mxu0
    %v761 = vadd.f32 %v747, %v760
    %762 = vdwg.mxu0
    %v763 = vmax.f32 %v759, 0.0
    %v764 = vmax.f32 %v761, 0.0
    %v765 = vpack.c.bf16 %v764, %v763
    %v766 = vld [vmem:[#allocation7] sm:$0xf]
    %v767 = vld [vmem:[#allocation7 + $0x4] sm:$0xf]
    %v768 = vld [vmem:[#allocation7 + $0x8] sm:$0xf]
    %v769 = vld [vmem:[#allocation7 + $0xc] sm:$0xf]
    %v770 = vld [vmem:[#allocation7 + $0x10] sm:$0xf]
    %v771 = vld [vmem:[#allocation7 + $0x14] sm:$0xf]
    %v772 = vld [vmem:[#allocation7 + $0x18] sm:$0xf]
    %v773 = vld [vmem:[#allocation7 + $0x1c] sm:$0xf]
    %v774 = vld [vmem:[#allocation7 + $0x20] sm:$0xf]
    %v775 = vld [vmem:[#allocation7 + $0x24] sm:$0xf]
    %v776 = vld [vmem:[#allocation7 + $0x28] sm:$0xf]
    %v777 = vld [vmem:[#allocation7 + $0x2c] sm:$0xf]
    %v778 = vld [vmem:[#allocation7 + $0x30] sm:$0xf]
    %v779 = vld [vmem:[#allocation7 + $0x34] sm:$0xf]
    %v780 = vld [vmem:[#allocation7 + $0x38] sm:$0xf]
    %v781 = vld [vmem:[#allocation7 + $0x3c] sm:$0xf]
    %v782 = vld [vmem:[%s4] sm:$0x1]
    %v784 = vperm.slane %v782, 0
    %v802 = vunpack.c.l.b16 %v766
    %v803 = vunpack.c.l.b16 %v767
    %v804 = vunpack.c.l.b16 %v768
    %v805 = vunpack.c.l.b16 %v769
    %v806 = vunpack.c.l.b16 %v770
    %v807 = vunpack.c.l.b16 %v771
    %v808 = vunpack.c.l.b16 %v772
    %v809 = vunpack.c.l.b16 %v773
    %v810 = vunpack.c.l.b16 %v774
    %v811 = vunpack.c.l.b16 %v775
    %v812 = vunpack.c.l.b16 %v776
    %v813 = vunpack.c.l.b16 %v777
    %v814 = vunpack.c.l.b16 %v778
    %v815 = vunpack.c.l.b16 %v779
    %v816 = vunpack.c.l.b16 %v780
    %v817 = vunpack.c.l.b16 %v781
    %v818 = vpack.c.b16 %v803, %v802
    %v819 = vpack.c.b16 %v805, %v804
    %v820 = vpack.c.b16 %v807, %v806
    %v821 = vpack.c.b16 %v809, %v808
    %v822 = vpack.c.b16 %v811, %v810
    %v823 = vpack.c.b16 %v813, %v812
    %v824 = vpack.c.b16 %v815, %v814
    %v825 = vpack.c.b16 %v817, %v816
    %834 = vmatpush.bf16.msra.mxu0 %v825
    %835 = vmatpush.bf16.msra.mxu0 %v824
    %836 = vmatpush.bf16.msra.mxu0 %v823
    %837 = vmatpush.bf16.msra.mxu0 %v822
    %838 = vmatpush.bf16.msra.mxu0 %v821
    %839 = vmatpush.bf16.msra.mxu0 %v820
    %840 = vmatpush.bf16.msra.mxu0 %v819
    %841 = vmatpush.bf16.msra.mxu0 %v818
    %842 = vmatmul.bf16.gmra.mxu0 %v765
    %v843 = vpop.f32.mrf.mxu0
    %v844 = vadd.f32 %v784, %v843
    %v845 = vpop.f32.mrf.mxu0
    %v846 = vadd.f32 %v784, %v845
    %847 = vdwg.mxu0
    %v848 = vmax.f32 %v844, 0.0
    %v849 = vmax.f32 %v846, 0.0
    %v850 = vpack.c.bf16 %v849, %v848
    %v851 = vld [vmem:[#allocation8] sm:$0xf]
    %v852 = vld [vmem:[#allocation8 + $0x4] sm:$0xf]
    %v853 = vld [vmem:[#allocation8 + $0x8] sm:$0xf]
    %v854 = vld [vmem:[#allocation8 + $0xc] sm:$0xf]
    %v855 = vld [vmem:[#allocation8 + $0x10] sm:$0xf]
    %v856 = vld [vmem:[#allocation8 + $0x14] sm:$0xf]
    %v857 = vld [vmem:[#allocation8 + $0x18] sm:$0xf]
    %v858 = vld [vmem:[#allocation8 + $0x1c] sm:$0xf]
    %v859 = vld [vmem:[#allocation8 + $0x20] sm:$0xf]
    %v860 = vld [vmem:[#allocation8 + $0x24] sm:$0xf]
    %v861 = vld [vmem:[#allocation8 + $0x28] sm:$0xf]
    %v862 = vld [vmem:[#allocation8 + $0x2c] sm:$0xf]
    %v863 = vld [vmem:[#allocation8 + $0x30] sm:$0xf]
    %v864 = vld [vmem:[#allocation8 + $0x34] sm:$0xf]
    %v865 = vld [vmem:[#allocation8 + $0x38] sm:$0xf]
    %v866 = vld [vmem:[#allocation8 + $0x3c] sm:$0xf]
    %v867 = vld [vmem:[%s6] sm:$0x1]
    %v869 = vperm.slane %v867, 0
    %v887 = vunpack.c.l.b16 %v851
    %v888 = vunpack.c.l.b16 %v852
    %v889 = vunpack.c.l.b16 %v853
    %v890 = vunpack.c.l.b16 %v854
    %v891 = vunpack.c.l.b16 %v855
    %v892 = vunpack.c.l.b16 %v856
    %v893 = vunpack.c.l.b16 %v857
    %v894 = vunpack.c.l.b16 %v858
    %v895 = vunpack.c.l.b16 %v859
    %v896 = vunpack.c.l.b16 %v860
    %v897 = vunpack.c.l.b16 %v861
    %v898 = vunpack.c.l.b16 %v862
    %v899 = vunpack.c.l.b16 %v863
    %v900 = vunpack.c.l.b16 %v864
    %v901 = vunpack.c.l.b16 %v865
    %v902 = vunpack.c.l.b16 %v866
    %v903 = vpack.c.b16 %v888, %v887
    %v904 = vpack.c.b16 %v890, %v889
    %v905 = vpack.c.b16 %v892, %v891
    %v906 = vpack.c.b16 %v894, %v893
    %v907 = vpack.c.b16 %v896, %v895
    %v908 = vpack.c.b16 %v898, %v897
    %v909 = vpack.c.b16 %v900, %v899
    %v910 = vpack.c.b16 %v902, %v901
    %919 = vmatpush.bf16.msra.mxu0 %v910
    %920 = vmatpush.bf16.msra.mxu0 %v909
    %921 = vmatpush.bf16.msra.mxu0 %v908
    %922 = vmatpush.bf16.msra.mxu0 %v907
    %923 = vmatpush.bf16.msra.mxu0 %v906
    %924 = vmatpush.bf16.msra.mxu0 %v905
    %925 = vmatpush.bf16.msra.mxu0 %v904
    %926 = vmatpush.bf16.msra.mxu0 %v903
    %927 = vmatmul.bf16.gmra.mxu0 %v850
    %v928 = vpop.f32.mrf.mxu0
    %v929 = vadd.f32 %v869, %v928
    %v930 = vpop.f32.mrf.mxu0
    %v931 = vadd.f32 %v869, %v930
    %932 = vdwg.mxu0
    %v933 = vmax.f32 %v929, 0.0
    %v934 = vmax.f32 %v931, 0.0
    %v935 = vpack.c.bf16 %v934, %v933
    %v936 = vld [vmem:[#allocation10] sm:$0xf]
    %v937 = vld [vmem:[#allocation10 + $0x4] sm:$0xf]
    %v938 = vld [vmem:[#allocation10 + $0x8] sm:$0xf]
    %v939 = vld [vmem:[#allocation10 + $0xc] sm:$0xf]
    %v940 = vld [vmem:[#allocation10 + $0x10] sm:$0xf]
    %v941 = vld [vmem:[#allocation10 + $0x14] sm:$0xf]
    %v942 = vld [vmem:[#allocation10 + $0x18] sm:$0xf]
    %v943 = vld [vmem:[#allocation10 + $0x1c] sm:$0xf]
    %v944 = vld [vmem:[#allocation10 + $0x20] sm:$0xf]
    %v945 = vld [vmem:[#allocation10 + $0x24] sm:$0xf]
    %v946 = vld [vmem:[#allocation10 + $0x28] sm:$0xf]
    %v947 = vld [vmem:[#allocation10 + $0x2c] sm:$0xf]
    %v948 = vld [vmem:[#allocation10 + $0x30] sm:$0xf]
    %v949 = vld [vmem:[#allocation10 + $0x34] sm:$0xf]
    %v950 = vld [vmem:[#allocation10 + $0x38] sm:$0xf]
    %v951 = vld [vmem:[#allocation10 + $0x3c] sm:$0xf]
    %v952 = vld [vmem:[%s8] sm:$0x1]
    %v954 = vperm.slane %v952, 0
    %v972 = vunpack.c.l.b16 %v936
    %v973 = vunpack.c.l.b16 %v937
    %v974 = vunpack.c.l.b16 %v938
    %v975 = vunpack.c.l.b16 %v939
    %v976 = vunpack.c.l.b16 %v940
    %v977 = vunpack.c.l.b16 %v941
    %v978 = vunpack.c.l.b16 %v942
    %v979 = vunpack.c.l.b16 %v943
    %v980 = vunpack.c.l.b16 %v944
    %v981 = vunpack.c.l.b16 %v945
    %v982 = vunpack.c.l.b16 %v946
    %v983 = vunpack.c.l.b16 %v947
    %v984 = vunpack.c.l.b16 %v948
    %v985 = vunpack.c.l.b16 %v949
    %v986 = vunpack.c.l.b16 %v950
    %v987 = vunpack.c.l.b16 %v951
    %v988 = vpack.c.b16 %v973, %v972
    %v989 = vpack.c.b16 %v975, %v974
    %v990 = vpack.c.b16 %v977, %v976
    %v991 = vpack.c.b16 %v979, %v978
    %v992 = vpack.c.b16 %v981, %v980
    %v993 = vpack.c.b16 %v983, %v982
    %v994 = vpack.c.b16 %v985, %v984
    %v995 = vpack.c.b16 %v987, %v986
    %1004 = vmatpush.bf16.msra.mxu0 %v995
    %1005 = vmatpush.bf16.msra.mxu0 %v994
    %1006 = vmatpush.bf16.msra.mxu0 %v993
    %1007 = vmatpush.bf16.msra.mxu0 %v992
    %1008 = vmatpush.bf16.msra.mxu0 %v991
    %1009 = vmatpush.bf16.msra.mxu0 %v990
    %1010 = vmatpush.bf16.msra.mxu0 %v989
    %1011 = vmatpush.bf16.msra.mxu0 %v988
    %1012 = vmatmul.bf16.gmra.mxu0 %v935
    %v1013 = vpop.f32.mrf.mxu0
    %v1014 = vadd.f32 %v954, %v1013
    %v1015 = vpop.f32.mrf.mxu0
    %v1016 = vadd.f32 %v954, %v1015
    %1017 = vdwg.mxu0
    %v1018 = vpack.c.bf16 %v1014, %v1014
    %v1019 = vpack.c.bf16 %v1016, %v1016
    %1020 = vst [vmem:[#allocation11] sm:$0xf] %v1018
    %1021 = vst [vmem:[#allocation11 + $0x4] sm:$0xf] %v1019
    // Predicated region
    $region58: #{tpu_custom_call.1} parent=1 // pred_check
      _
    $region59: #{tpu_custom_call.1} parent=1 // pred_check_branch
      %1023 = sbr.rel (0) target = $region61
    $region60: #{tpu_custom_call.1} parent=1 // pred_region
      %1025 = vsyncadd [#allocation4], 0
      %s1026 = sshll.u32 [#allocation11], 4
      %s1027 = int_to_ptr.vmem [resolvable:$true] %s1026
      %s1028 = sshll.u32 %s9, 4
      %s1029 = int_to_ptr.hbm [resolvable:$true] %s1028
      %1034 = dma.vmem_to_hbm [thread:$0]  %s1027, 128, %s1029, [#allocation4], 64, 64, 4
    $region61: #{tpu_custom_call.1} parent=1 // pred_fallthru
      _
    // Predicated region
    $region62: #{tpu_custom_call.1} parent=1 // pred_check
      _
    $region63: #{tpu_custom_call.1} parent=1 // pred_check_branch
      %1036 = sbr.rel (0) target = $region65
    $region64: #{tpu_custom_call.1} parent=1 // pred_region
      %1038 = dma.done [#allocation4], 128
    $region65: #{tpu_custom_call.1} parent=1 // pred_fallthru
      _
    %1039 = vsyncpa [#allocation3], 1
    %1040 = vsyncpa [#allocation6], 1
    %1041 = vsyncpa [#allocation9], 1
    %1042 = vsyncpa [#allocation4], 1

// kernel: tpu_custom_call.1
$region0: #{tpu_custom_call.1}
  #allocation0 [shape = 'u32[]', space=smem, size = 0x4, offset = 0x4, fixed_abs, tag = 'smem constant byte address 0x4 - core index']
  #allocation1 [shape = 'u32[72,128]{1,0:T(1,128)}', space=vmem, size = 0x9000, scoped, tag = 'internal scratch']
  %s0 = inlined_call_operand.hbm [shape: f32[16,1024], index: 0, kind: input, shape index: {}]
  %s1 = inlined_call_operand.hbm [shape: bf16[1024,128], index: 1, kind: input, shape index: {}]
  %s2 = inlined_call_operand.vmem [shape: f32[1,128], index: 2, kind: input, shape index: {}]
  %s3 = inlined_call_operand.hbm [shape: bf16[128,128], index: 3, kind: input, shape index: {}]
  %s4 = inlined_call_operand.vmem [shape: f32[1,128], index: 4, kind: input, shape index: {}]
  %s5 = inlined_call_operand.hbm [shape: bf16[128,128], index: 5, kind: input, shape index: {}]
  %s6 = inlined_call_operand.vmem [shape: f32[1,128], index: 6, kind: input, shape index: {}]
  %s7 = inlined_call_operand.hbm [shape: bf16[128,128], index: 7, kind: input, shape index: {}]
  %s8 = inlined_call_operand.vmem [shape: f32[1,128], index: 8, kind: input, shape index: {}]
  %s9 = inlined_call_operand.hbm [shape: bf16[16,128], index: 9, kind: output, shape index: {}]
  %s10 = sld [smem:[#allocation0]]
  $region66: #{tpu_custom_call.1} parent=0
    _
  %s12 = ssub.s32 1, %s10
  %s13 = scalar_select 0, %s12, %s10
  $region1: #{tpu_custom_call.1} parent=0
    #allocation2 [shape = 'u8[65536]{0}', space=vmem, size = 0x10000, scoped, tag = 'input window, operand 0, single buffered']
    #allocation3 [shape = 's32[1]{0}', space=sflag, size = 0x4, scoped, tag = 'scoped memory for tpu_custom_call.1']
    #allocation4 [shape = 's32[1]{0}', space=sflag, size = 0x4, scoped, tag = 'scoped memory for tpu_custom_call.1']
    #allocation5 [shape = 'u8[262144]{0}', space=vmem, size = 0x40000, scoped, tag = 'input window, operand 1, single buffered']
    #allocation6 [shape = 's32[1]{0}', space=sflag, size = 0x4, scoped, tag = 'scoped memory for tpu_custom_call.1']
    #allocation7 [shape = 'u8[32768]{0}', space=vmem, size = 0x8000, scoped, tag = 'input window, operand 3, single buffered']
    #allocation8 [shape = 'u8[32768]{0}', space=vmem, size = 0x8000, scoped, tag = 'input window, operand 5, single buffered']
    #allocation9 [shape = 's32[1]{0}', space=sflag, size = 0x4, scoped, tag = 'scoped memory for tpu_custom_call.1']
    #allocation10 [shape = 'u8[32768]{0}', space=vmem, size = 0x8000, scoped, tag = 'input window, operand 7, single buffered']
    #allocation11 [shape = 'u8[4096]{0}', space=vmem, size = 0x1000, scoped, tag = 'output window, operand 0, single buffered']
    %14 = vsyncpa [#allocation3], 0
    %15 = vsyncpa [#allocation6], 0
    %16 = vsyncpa [#allocation9], 0
    %17 = vsyncpa [#allocation4], 0
    // Predicated region
    $region2: #{tpu_custom_call.1} parent=1 // pred_check
      _
    $region3: #{tpu_custom_call.1} parent=1 // pred_check_branch
      %19 = sbr.rel (0) target = $region5
    $region4: #{tpu_custom_call.1} parent=1 // pred_region
      %21 = vsyncadd [#allocation3], 0
      %s22 = sshll.u32 %s0, 4
      %s23 = int_to_ptr.hbm [resolvable:$true] %s22
      %s24 = sshll.u32 [#allocation2], 4
      %s25 = int_to_ptr.vmem [resolvable:$true] %s24
      %30 = dma.hbm_to_vmem [thread:$0]  %s23, 2048, %s25, [#allocation3], 1024, 1024, 64
    $region5: #{tpu_custom_call.1} parent=1 // pred_fallthru
      _
    // Predicated region
    $region6: #{tpu_custom_call.1} parent=1 // pred_check
      _
    $region7: #{tpu_custom_call.1} parent=1 // pred_check_branch
      %32 = sbr.rel (0) target = $region9
    $region8: #{tpu_custom_call.1} parent=1 // pred_region
      %34 = vsyncadd [#allocation6], 0
      %s35 = sshll.u32 %s1, 4
      %s36 = int_to_ptr.hbm [resolvable:$true] %s35
      %s37 = sshll.u32 [#allocation5], 4
      %s38 = int_to_ptr.vmem [resolvable:$true] %s37
      %43 = dma.hbm_to_vmem [thread:$0]  %s36, 8192, %s38, [#allocation6], 64, 64, 4
    $region9: #{tpu_custom_call.1} parent=1 // pred_fallthru
      _
    // Predicated region
    $region10: #{tpu_custom_call.1} parent=1 // pred_check
      _
    $region11: #{tpu_custom_call.1} parent=1 // pred_check_branch
      %45 = sbr.rel (0) target = $region13
    $region12: #{tpu_custom_call.1} parent=1 // pred_region
      _
    $region13: #{tpu_custom_call.1} parent=1 // pred_fallthru
      _
    // Predicated region
    $region14: #{tpu_custom_call.1} parent=1 // pred_check
      _
    $region15: #{tpu_custom_call.1} parent=1 // pred_check_branch
      %47 = sbr.rel (0) target = $region17
    $region16: #{tpu_custom_call.1} parent=1 // pred_region
      %49 = vsyncadd [#allocation6], 0
      %s50 = sshll.u32 %s3, 4
      %s51 = int_to_ptr.hbm [resolvable:$true] %s50
      %s52 = sshll.u32 [#allocation7], 4
      %s53 = int_to_ptr.vmem [resolvable:$true] %s52
      %58 = dma.hbm_to_vmem [thread:$0]  %s51, 1024, %s53, [#allocation6], 64, 64, 4
    $region17: #{tpu_custom_call.1} parent=1 // pred_fallthru
      _
    // Predicated region
    $region18: #{tpu_custom_call.1} parent=1 // pred_check
      _
    $region19: #{tpu_custom_call.1} parent=1 // pred_check_branch
      %60 = sbr.rel (0) target = $region21
    $region20: #{tpu_custom_call.1} parent=1 // pred_region
      _
    $region21: #{tpu_custom_call.1} parent=1 // pred_fallthru
      _
    // Predicated region
    $region22: #{tpu_custom_call.1} parent=1 // pred_check
      _
    $region23: #{tpu_custom_call.1} parent=1 // pred_check_branch
      %62 = sbr.rel (0) target = $region25
    $region24: #{tpu_custom_call.1} parent=1 // pred_region
      %64 = vsyncadd [#allocation9], 0
      %s65 = sshll.u32 %s5, 4
      %s66 = int_to_ptr.hbm [resolvable:$true] %s65
      %s67 = sshll.u32 [#allocation8], 4
      %s68 = int_to_ptr.vmem [resolvable:$true] %s67
      %73 = dma.hbm_to_vmem [thread:$0]  %s66, 1024, %s68, [#allocation9], 64, 64, 4
    $region25: #{tpu_custom_call.1} parent=1 // pred_fallthru
      _
    // Predicated region
    $region26: #{tpu_custom_call.1} parent=1 // pred_check
      _
    $region27: #{tpu_custom_call.1} parent=1 // pred_check_branch
      %75 = sbr.rel (0) target = $region29
    $region28: #{tpu_custom_call.1} parent=1 // pred_region
      _
    $region29: #{tpu_custom_call.1} parent=1 // pred_fallthru
      _
    // Predicated region
    $region30: #{tpu_custom_call.1} parent=1 // pred_check
      _
    $region31: #{tpu_custom_call.1} parent=1 // pred_check_branch
      %77 = sbr.rel (0) target = $region33
    $region32: #{tpu_custom_call.1} parent=1 // pred_region
      %79 = vsyncadd [#allocation9], 0
      %s80 = sshll.u32 %s7, 4
      %s81 = int_to_ptr.hbm [resolvable:$true] %s80
      %s82 = sshll.u32 [#allocation10], 4
      %s83 = int_to_ptr.vmem [resolvable:$true] %s82
      %88 = dma.hbm_to_vmem [thread:$0]  %s81, 1024, %s83, [#allocation9], 64, 64, 4
    $region33: #{tpu_custom_call.1} parent=1 // pred_fallthru
      _
    // Predicated region
    $region34: #{tpu_custom_call.1} parent=1 // pred_check
      _
    $region35: #{tpu_custom_call.1} parent=1 // pred_check_branch
      %90 = sbr.rel (0) target = $region37
    $region36: #{tpu_custom_call.1} parent=1 // pred_region
      _
    $region37: #{tpu_custom_call.1} parent=1 // pred_fallthru
      _
    // Predicated region
    $region38: #{tpu_custom_call.1} parent=1 // pred_check
      _
    $region39: #{tpu_custom_call.1} parent=1 // pred_check_branch
      %92 = sbr.rel (0) target = $region41
    $region40: #{tpu_custom_call.1} parent=1 // pred_region
      %94 = dma.done [#allocation3], 2048
    $region41: #{tpu_custom_call.1} parent=1 // pred_fallthru
      _
    // Predicated region
    $region42: #{tpu_custom_call.1} parent=1 // pred_check
      _
    $region43: #{tpu_custom_call.1} parent=1 // pred_check_branch
      %96 = sbr.rel (0) target = $region45
    $region44: #{tpu_custom_call.1} parent=1 // pred_region
      %98 = dma.done [#allocation6], 8192
    $region45: #{tpu_custom_call.1} parent=1 // pred_fallthru
      _
    // Predicated region
    $region46: #{tpu_custom_call.1} parent=1 // pred_check
      _
    $region47: #{tpu_custom_call.1} parent=1 // pred_check_branch
      %100 = sbr.rel (0) target = $region49
    $region48: #{tpu_custom_call.1} parent=1 // pred_region
      %102 = dma.done [#allocation6], 1024
    $region49: #{tpu_custom_call.1} parent=1 // pred_fallthru
      _
    // Predicated region
    $region50: #{tpu_custom_call.1} parent=1 // pred_check
      _
    $region51: #{tpu_custom_call.1} parent=1 // pred_check_branch
      %104 = sbr.rel (0) target = $region53
    $region52: #{tpu_custom_call.1} parent=1 // pred_region
      %106 = dma.done [#allocation9], 1024
    $region53: #{tpu_custom_call.1} parent=1 // pred_fallthru
      _
    // Predicated region
    $region54: #{tpu_custom_call.1} parent=1 // pred_check
      _
    $region55: #{tpu_custom_call.1} parent=1 // pred_check_branch
      %108 = sbr.rel (0) target = $region57
    $region56: #{tpu_custom_call.1} parent=1 // pred_region
      %110 = dma.done [#allocation9], 1024
    $region57: #{tpu_custom_call.1} parent=1 // pred_fallthru
      _
    %v111 = vld [vmem:[#allocation2] sm:$0xff]
    %v112 = vld [vmem:[#allocation2 + $0x8] sm:$0xff]
    %v113 = vld [vmem:[#allocation2 + $0x10] sm:$0xff]
    %v114 = vld [vmem:[#allocation2 + $0x18] sm:$0xff]
    %v115 = vld [vmem:[#allocation2 + $0x20] sm:$0xff]
    %v116 = vld [vmem:[#allocation2 + $0x28] sm:$0xff]
    %v117 = vld [vmem:[#allocation2 + $0x30] sm:$0xff]
    %v118 = vld [vmem:[#allocation2 + $0x38] sm:$0xff]
    %v119 = vld [vmem:[#allocation2 + $0x40] sm:$0xff]
    %v120 = vld [vmem:[#allocation2 + $0x48] sm:$0xff]
    %v121 = vld [vmem:[#allocation2 + $0x50] sm:$0xff]
    %v122 = vld [vmem:[#allocation2 + $0x58] sm:$0xff]
    %v123 = vld [vmem:[#allocation2 + $0x60] sm:$0xff]
    %v124 = vld [vmem:[#allocation2 + $0x68] sm:$0xff]
    %v125 = vld [vmem:[#allocation2 + $0x70] sm:$0xff]
    %v126 = vld [vmem:[#allocation2 + $0x78] sm:$0xff]
    %v127 = vpack.c.bf16 %v119, %v111
    %v128 = vpack.c.bf16 %v120, %v112
    %v129 = vpack.c.bf16 %v121, %v113
    %v130 = vpack.c.bf16 %v122, %v114
    %v131 = vpack.c.bf16 %v123, %v115
    %v132 = vpack.c.bf16 %v124, %v116
    %v133 = vpack.c.bf16 %v125, %v117
    %v134 = vpack.c.bf16 %v126, %v118
    %v135 = vld [vmem:[#allocation5] sm:$0xf]
    %v136 = vld [vmem:[#allocation5 + $0x4] sm:$0xf]
    %v137 = vld [vmem:[#allocation5 + $0x8] sm:$0xf]
    %v138 = vld [vmem:[#allocation5 + $0xc] sm:$0xf]
    %v139 = vld [vmem:[#allocation5 + $0x10] sm:$0xf]
    %v140 = vld [vmem:[#allocation5 + $0x14] sm:$0xf]
    %v141 = vld [vmem:[#allocation5 + $0x18] sm:$0xf]
    %v142 = vld [vmem:[#allocation5 + $0x1c] sm:$0xf]
    %v143 = vld [vmem:[#allocation5 + $0x20] sm:$0xf]
    %v144 = vld [vmem:[#allocation5 + $0x24] sm:$0xf]
    %v145 = vld [vmem:[#allocation5 + $0x28] sm:$0xf]
    %v146 = vld [vmem:[#allocation5 + $0x2c] sm:$0xf]
    %v147 = vld [vmem:[#allocation5 + $0x30] sm:$0xf]
    %v148 = vld [vmem:[#allocation5 + $0x34] sm:$0xf]
    %v149 = vld [vmem:[#allocation5 + $0x38] sm:$0xf]
    %v150 = vld [vmem:[#allocation5 + $0x3c] sm:$0xf]
    %v151 = vld [vmem:[#allocation5 + $0x40] sm:$0xf]
    %v152 = vld [vmem:[#allocation5 + $0x44] sm:$0xf]
    %v153 = vld [vmem:[#allocation5 + $0x48] sm:$0xf]
    %v154 = vld [vmem:[#allocation5 + $0x4c] sm:$0xf]
    %v155 = vld [vmem:[#allocation5 + $0x50] sm:$0xf]
    %v156 = vld [vmem:[#allocation5 + $0x54] sm:$0xf]
    %v157 = vld [vmem:[#allocation5 + $0x58] sm:$0xf]
    %v158 = vld [vmem:[#allocation5 + $0x5c] sm:$0xf]
    %v159 = vld [vmem:[#allocation5 + $0x60] sm:$0xf]
    %v160 = vld [vmem:[#allocation5 + $0x64] sm:$0xf]
    %v161 = vld [vmem:[#allocation5 + $0x68] sm:$0xf]
    %v162 = vld [vmem:[#allocation5 + $0x6c] sm:$0xf]
    %v163 = vld [vmem:[#allocation5 + $0x70] sm:$0xf]
    %v164 = vld [vmem:[#allocation5 + $0x74] sm:$0xf]
    %v165 = vld [vmem:[#allocation5 + $0x78] sm:$0xf]
    %v166 = vld [vmem:[#allocation5 + $0x7c] sm:$0xf]
    %v167 = vld [vmem:[#allocation5 + $0x80] sm:$0xf]
    %v168 = vld [vmem:[#allocation5 + $0x84] sm:$0xf]
    %v169 = vld [vmem:[#allocation5 + $0x88] sm:$0xf]
    %v170 = vld [vmem:[#allocation5 + $0x8c] sm:$0xf]
    %v171 = vld [vmem:[#allocation5 + $0x90] sm:$0xf]
    %v172 = vld [vmem:[#allocation5 + $0x94] sm:$0xf]
    %v173 = vld [vmem:[#allocation5 + $0x98] sm:$0xf]
    %v174 = vld [vmem:[#allocation5 + $0x9c] sm:$0xf]
    %v175 = vld [vmem:[#allocation5 + $0xa0] sm:$0xf]
    %v176 = vld [vmem:[#allocation5 + $0xa4] sm:$0xf]
    %v177 = vld [vmem:[#allocation5 + $0xa8] sm:$0xf]
    %v178 = vld [vmem:[#allocation5 + $0xac] sm:$0xf]
    %v179 = vld [vmem:[#allocation5 + $0xb0] sm:$0xf]
    %v180 = vld [vmem:[#allocation5 + $0xb4] sm:$0xf]
    %v181 = vld [vmem:[#allocation5 + $0xb8] sm:$0xf]
    %v182 = vld [vmem:[#allocation5 + $0xbc] sm:$0xf]
    %v183 = vld [vmem:[#allocation5 + $0xc0] sm:$0xf]
    %v184 = vld [vmem:[#allocation5 + $0xc4] sm:$0xf]
    %v185 = vld [vmem:[#allocation5 + $0xc8] sm:$0xf]
    %v186 = vld [vmem:[#allocation5 + $0xcc] sm:$0xf]
    %v187 = vld [vmem:[#allocation5 + $0xd0] sm:$0xf]
    %v188 = vld [vmem:[#allocation5 + $0xd4] sm:$0xf]
    %v189 = vld [vmem:[#allocation5 + $0xd8] sm:$0xf]
    %v190 = vld [vmem:[#allocation5 + $0xdc] sm:$0xf]
    %v191 = vld [vmem:[#allocation5 + $0xe0] sm:$0xf]
    %v192 = vld [vmem:[#allocation5 + $0xe4] sm:$0xf]
    %v193 = vld [vmem:[#allocation5 + $0xe8] sm:$0xf]
    %v194 = vld [vmem:[#allocation5 + $0xec] sm:$0xf]
    %v195 = vld [vmem:[#allocation5 + $0xf0] sm:$0xf]
    %v196 = vld [vmem:[#allocation5 + $0xf4] sm:$0xf]
    %v197 = vld [vmem:[#allocation5 + $0xf8] sm:$0xf]
    %v198 = vld [vmem:[#allocation5 + $0xfc] sm:$0xf]
    %v199 = vld [vmem:[#allocation5 + $0x100] sm:$0xf]
    %v200 = vld [vmem:[#allocation5 + $0x104] sm:$0xf]
    %v201 = vld [vmem:[#allocation5 + $0x108] sm:$0xf]
    %v202 = vld [vmem:[#allocation5 + $0x10c] sm:$0xf]
    %v203 = vld [vmem:[#allocation5 + $0x110] sm:$0xf]
    %v204 = vld [vmem:[#allocation5 + $0x114] sm:$0xf]
    %v205 = vld [vmem:[#allocation5 + $0x118] sm:$0xf]
    %v206 = vld [vmem:[#allocation5 + $0x11c] sm:$0xf]
    %v207 = vld [vmem:[#allocation5 + $0x120] sm:$0xf]
    %v208 = vld [vmem:[#allocation5 + $0x124] sm:$0xf]
    %v209 = vld [vmem:[#allocation5 + $0x128] sm:$0xf]
    %v210 = vld [vmem:[#allocation5 + $0x12c] sm:$0xf]
    %v211 = vld [vmem:[#allocation5 + $0x130] sm:$0xf]
    %v212 = vld [vmem:[#allocation5 + $0x134] sm:$0xf]
    %v213 = vld [vmem:[#allocation5 + $0x138] sm:$0xf]
    %v214 = vld [vmem:[#allocation5 + $0x13c] sm:$0xf]
    %v215 = vld [vmem:[#allocation5 + $0x140] sm:$0xf]
    %v216 = vld [vmem:[#allocation5 + $0x144] sm:$0xf]
    %v217 = vld [vmem:[#allocation5 + $0x148] sm:$0xf]
    %v218 = vld [vmem:[#allocation5 + $0x14c] sm:$0xf]
    %v219 = vld [vmem:[#allocation5 + $0x150] sm:$0xf]
    %v220 = vld [vmem:[#allocation5 + $0x154] sm:$0xf]
    %v221 = vld [vmem:[#allocation5 + $0x158] sm:$0xf]
    %v222 = vld [vmem:[#allocation5 + $0x15c] sm:$0xf]
    %v223 = vld [vmem:[#allocation5 + $0x160] sm:$0xf]
    %v224 = vld [vmem:[#allocation5 + $0x164] sm:$0xf]
    %v225 = vld [vmem:[#allocation5 + $0x168] sm:$0xf]
    %v226 = vld [vmem:[#allocation5 + $0x16c] sm:$0xf]
    %v227 = vld [vmem:[#allocation5 + $0x170] sm:$0xf]
    %v228 = vld [vmem:[#allocation5 + $0x174] sm:$0xf]
    %v229 = vld [vmem:[#allocation5 + $0x178] sm:$0xf]
    %v230 = vld [vmem:[#allocation5 + $0x17c] sm:$0xf]
    %v231 = vld [vmem:[#allocation5 + $0x180] sm:$0xf]
    %v232 = vld [vmem:[#allocation5 + $0x184] sm:$0xf]
    %v233 = vld [vmem:[#allocation5 + $0x188] sm:$0xf]
    %v234 = vld [vmem:[#allocation5 + $0x18c] sm:$0xf]
    %v235 = vld [vmem:[#allocation5 + $0x190] sm:$0xf]
    %v236 = vld [vmem:[#allocation5 + $0x194] sm:$0xf]
    %v237 = vld [vmem:[#allocation5 + $0x198] sm:$0xf]
    %v238 = vld [vmem:[#allocation5 + $0x19c] sm:$0xf]
    %v239 = vld [vmem:[#allocation5 + $0x1a0] sm:$0xf]
    %v240 = vld [vmem:[#allocation5 + $0x1a4] sm:$0xf]
    %v241 = vld [vmem:[#allocation5 + $0x1a8] sm:$0xf]
    %v242 = vld [vmem:[#allocation5 + $0x1ac] sm:$0xf]
    %v243 = vld [vmem:[#allocation5 + $0x1b0] sm:$0xf]
    %v244 = vld [vmem:[#allocation5 + $0x1b4] sm:$0xf]
    %v245 = vld [vmem:[#allocation5 + $0x1b8] sm:$0xf]
    %v246 = vld [vmem:[#allocation5 + $0x1bc] sm:$0xf]
    %v247 = vld [vmem:[#allocation5 + $0x1c0] sm:$0xf]
    %v248 = vld [vmem:[#allocation5 + $0x1c4] sm:$0xf]
    %v249 = vld [vmem:[#allocation5 + $0x1c8] sm:$0xf]
    %v250 = vld [vmem:[#allocation5 + $0x1cc] sm:$0xf]
    %v251 = vld [vmem:[#allocation5 + $0x1d0] sm:$0xf]
    %v252 = vld [vmem:[#allocation5 + $0x1d4] sm:$0xf]
    %v253 = vld [vmem:[#allocation5 + $0x1d8] sm:$0xf]
    %v254 = vld [vmem:[#allocation5 + $0x1dc] sm:$0xf]
    %v255 = vld [vmem:[#allocation5 + $0x1e0] sm:$0xf]
    %v256 = vld [vmem:[#allocation5 + $0x1e4] sm:$0xf]
    %v257 = vld [vmem:[#allocation5 + $0x1e8] sm:$0xf]
    %v258 = vld [vmem:[#allocation5 + $0x1ec] sm:$0xf]
    %v259 = vld [vmem:[#allocation5 + $0x1f0] sm:$0xf]
    %v260 = vld [vmem:[#allocation5 + $0x1f4] sm:$0xf]
    %v261 = vld [vmem:[#allocation5 + $0x1f8] sm:$0xf]
    %v262 = vld [vmem:[#allocation5 + $0x1fc] sm:$0xf]
    %v263 = vld [vmem:[%s2] sm:$0x1]
    %v265 = vperm.slane %v263, 0
    %v395 = vunpack.c.l.b16 %v135
    %v396 = vunpack.c.l.b16 %v136
    %v397 = vunpack.c.l.b16 %v137
    %v398 = vunpack.c.l.b16 %v138
    %v399 = vunpack.c.l.b16 %v139
    %v400 = vunpack.c.l.b16 %v140
    %v401 = vunpack.c.l.b16 %v141
    %v402 = vunpack.c.l.b16 %v142
    %v403 = vunpack.c.l.b16 %v143
    %v404 = vunpack.c.l.b16 %v144
    %v405 = vunpack.c.l.b16 %v145
    %v406 = vunpack.c.l.b16 %v146
    %v407 = vunpack.c.l.b16 %v147
    %v408 = vunpack.c.l.b16 %v148
    %v409 = vunpack.c.l.b16 %v149
    %v410 = vunpack.c.l.b16 %v150
    %v411 = vunpack.c.l.b16 %v151
    %v412 = vunpack.c.l.b16 %v152
    %v413 = vunpack.c.l.b16 %v153
    %v414 = vunpack.c.l.b16 %v154
    %v415 = vunpack.c.l.b16 %v155
    %v416 = vunpack.c.l.b16 %v156
    %v417 = vunpack.c.l.b16 %v157
    %v418 = vunpack.c.l.b16 %v158
    %v419 = vunpack.c.l.b16 %v159
    %v420 = vunpack.c.l.b16 %v160
    %v421 = vunpack.c.l.b16 %v161
    %v422 = vunpack.c.l.b16 %v162
    %v423 = vunpack.c.l.b16 %v163
    %v424 = vunpack.c.l.b16 %v164
    %v425 = vunpack.c.l.b16 %v165
    %v426 = vunpack.c.l.b16 %v166
    %v427 = vunpack.c.l.b16 %v167
    %v428 = vunpack.c.l.b16 %v168
    %v429 = vunpack.c.l.b16 %v169
    %v430 = vunpack.c.l.b16 %v170
    %v431 = vunpack.c.l.b16 %v171
    %v432 = vunpack.c.l.b16 %v172
    %v433 = vunpack.c.l.b16 %v173
    %v434 = vunpack.c.l.b16 %v174
    %v435 = vunpack.c.l.b16 %v175
    %v436 = vunpack.c.l.b16 %v176
    %v437 = vunpack.c.l.b16 %v177
    %v438 = vunpack.c.l.b16 %v178
    %v439 = vunpack.c.l.b16 %v179
    %v440 = vunpack.c.l.b16 %v180
    %v441 = vunpack.c.l.b16 %v181
    %v442 = vunpack.c.l.b16 %v182
    %v443 = vunpack.c.l.b16 %v183
    %v444 = vunpack.c.l.b16 %v184
    %v445 = vunpack.c.l.b16 %v185
    %v446 = vunpack.c.l.b16 %v186
    %v447 = vunpack.c.l.b16 %v187
    %v448 = vunpack.c.l.b16 %v188
    %v449 = vunpack.c.l.b16 %v189
    %v450 = vunpack.c.l.b16 %v190
    %v451 = vunpack.c.l.b16 %v191
    %v452 = vunpack.c.l.b16 %v192
    %v453 = vunpack.c.l.b16 %v193
    %v454 = vunpack.c.l.b16 %v194
    %v455 = vunpack.c.l.b16 %v195
    %v456 = vunpack.c.l.b16 %v196
    %v457 = vunpack.c.l.b16 %v197
    %v458 = vunpack.c.l.b16 %v198
    %v459 = vunpack.c.l.b16 %v199
    %v460 = vunpack.c.l.b16 %v200
    %v461 = vunpack.c.l.b16 %v201
    %v462 = vunpack.c.l.b16 %v202
    %v463 = vunpack.c.l.b16 %v203
    %v464 = vunpack.c.l.b16 %v204
    %v465 = vunpack.c.l.b16 %v205
    %v466 = vunpack.c.l.b16 %v206
    %v467 = vunpack.c.l.b16 %v207
    %v468 = vunpack.c.l.b16 %v208
    %v469 = vunpack.c.l.b16 %v209
    %v470 = vunpack.c.l.b16 %v210
    %v471 = vunpack.c.l.b16 %v211
    %v472 = vunpack.c.l.b16 %v212
    %v473 = vunpack.c.l.b16 %v213
    %v474 = vunpack.c.l.b16 %v214
    %v475 = vunpack.c.l.b16 %v215
    %v476 = vunpack.c.l.b16 %v216
    %v477 = vunpack.c.l.b16 %v217
    %v478 = vunpack.c.l.b16 %v218
    %v479 = vunpack.c.l.b16 %v219
    %v480 = vunpack.c.l.b16 %v220
    %v481 = vunpack.c.l.b16 %v221
    %v482 = vunpack.c.l.b16 %v222
    %v483 = vunpack.c.l.b16 %v223
    %v484 = vunpack.c.l.b16 %v224
    %v485 = vunpack.c.l.b16 %v225
    %v486 = vunpack.c.l.b16 %v226
    %v487 = vunpack.c.l.b16 %v227
    %v488 = vunpack.c.l.b16 %v228
    %v489 = vunpack.c.l.b16 %v229
    %v490 = vunpack.c.l.b16 %v230
    %v491 = vunpack.c.l.b16 %v231
    %v492 = vunpack.c.l.b16 %v232
    %v493 = vunpack.c.l.b16 %v233
    %v494 = vunpack.c.l.b16 %v234
    %v495 = vunpack.c.l.b16 %v235
    %v496 = vunpack.c.l.b16 %v236
    %v497 = vunpack.c.l.b16 %v237
    %v498 = vunpack.c.l.b16 %v238
    %v499 = vunpack.c.l.b16 %v239
    %v500 = vunpack.c.l.b16 %v240
    %v501 = vunpack.c.l.b16 %v241
    %v502 = vunpack.c.l.b16 %v242
    %v503 = vunpack.c.l.b16 %v243
    %v504 = vunpack.c.l.b16 %v244
    %v505 = vunpack.c.l.b16 %v245
    %v506 = vunpack.c.l.b16 %v246
    %v507 = vunpack.c.l.b16 %v247
    %v508 = vunpack.c.l.b16 %v248
    %v509 = vunpack.c.l.b16 %v249
    %v510 = vunpack.c.l.b16 %v250
    %v511 = vunpack.c.l.b16 %v251
    %v512 = vunpack.c.l.b16 %v252
    %v513 = vunpack.c.l.b16 %v253
    %v514 = vunpack.c.l.b16 %v254
    %v515 = vunpack.c.l.b16 %v255
    %v516 = vunpack.c.l.b16 %v256
    %v517 = vunpack.c.l.b16 %v257
    %v518 = vunpack.c.l.b16 %v258
    %v519 = vunpack.c.l.b16 %v259
    %v520 = vunpack.c.l.b16 %v260
    %v521 = vunpack.c.l.b16 %v261
    %v522 = vunpack.c.l.b16 %v262
    %v523 = vpack.c.b16 %v396, %v395
    %v524 = vpack.c.b16 %v398, %v397
    %v525 = vpack.c.b16 %v400, %v399
    %v526 = vpack.c.b16 %v402, %v401
    %v527 = vpack.c.b16 %v404, %v403
    %v528 = vpack.c.b16 %v406, %v405
    %v529 = vpack.c.b16 %v408, %v407
    %v530 = vpack.c.b16 %v410, %v409
    %v531 = vpack.c.b16 %v412, %v411
    %v532 = vpack.c.b16 %v414, %v413
    %v533 = vpack.c.b16 %v416, %v415
    %v534 = vpack.c.b16 %v418, %v417
    %v535 = vpack.c.b16 %v420, %v419
    %v536 = vpack.c.b16 %v422, %v421
    %v537 = vpack.c.b16 %v424, %v423
    %v538 = vpack.c.b16 %v426, %v425
    %v539 = vpack.c.b16 %v428, %v427
    %v540 = vpack.c.b16 %v430, %v429
    %v541 = vpack.c.b16 %v432, %v431
    %v542 = vpack.c.b16 %v434, %v433
    %v543 = vpack.c.b16 %v436, %v435
    %v544 = vpack.c.b16 %v438, %v437
    %v545 = vpack.c.b16 %v440, %v439
    %v546 = vpack.c.b16 %v442, %v441
    %v547 = vpack.c.b16 %v444, %v443
    %v548 = vpack.c.b16 %v446, %v445
    %v549 = vpack.c.b16 %v448, %v447
    %v550 = vpack.c.b16 %v450, %v449
    %v551 = vpack.c.b16 %v452, %v451
    %v552 = vpack.c.b16 %v454, %v453
    %v553 = vpack.c.b16 %v456, %v455
    %v554 = vpack.c.b16 %v458, %v457
    %v555 = vpack.c.b16 %v460, %v459
    %v556 = vpack.c.b16 %v462, %v461
    %v557 = vpack.c.b16 %v464, %v463
    %v558 = vpack.c.b16 %v466, %v465
    %v559 = vpack.c.b16 %v468, %v467
    %v560 = vpack.c.b16 %v470, %v469
    %v561 = vpack.c.b16 %v472, %v471
    %v562 = vpack.c.b16 %v474, %v473
    %v563 = vpack.c.b16 %v476, %v475
    %v564 = vpack.c.b16 %v478, %v477
    %v565 = vpack.c.b16 %v480, %v479
    %v566 = vpack.c.b16 %v482, %v481
    %v567 = vpack.c.b16 %v484, %v483
    %v568 = vpack.c.b16 %v486, %v485
    %v569 = vpack.c.b16 %v488, %v487
    %v570 = vpack.c.b16 %v490, %v489
    %v571 = vpack.c.b16 %v492, %v491
    %v572 = vpack.c.b16 %v494, %v493
    %v573 = vpack.c.b16 %v496, %v495
    %v574 = vpack.c.b16 %v498, %v497
    %v575 = vpack.c.b16 %v500, %v499
    %v576 = vpack.c.b16 %v502, %v501
    %v577 = vpack.c.b16 %v504, %v503
    %v578 = vpack.c.b16 %v506, %v505
    %v579 = vpack.c.b16 %v508, %v507
    %v580 = vpack.c.b16 %v510, %v509
    %v581 = vpack.c.b16 %v512, %v511
    %v582 = vpack.c.b16 %v514, %v513
    %v583 = vpack.c.b16 %v516, %v515
    %v584 = vpack.c.b16 %v518, %v517
    %v585 = vpack.c.b16 %v520, %v519
    %v586 = vpack.c.b16 %v522, %v521
    %651 = vmatpush.bf16.msra.mxu0 %v530
    %652 = vmatpush.bf16.msra.mxu0 %v529
    %653 = vmatpush.bf16.msra.mxu0 %v528
    %654 = vmatpush.bf16.msra.mxu0 %v527
    %655 = vmatpush.bf16.msra.mxu0 %v526
    %656 = vmatpush.bf16.msra.mxu0 %v525
    %657 = vmatpush.bf16.msra.mxu0 %v524
    %658 = vmatpush.bf16.msra.mxu0 %v523
    %659 = vmatmul.bf16.gmra.mxu0 %v127
    %v660 = vpop.f32.mrf.mxu0
    %v661 = vadd.f32 %v265, %v660
    %v662 = vpop.f32.mrf.mxu0
    %v663 = vadd.f32 %v265, %v662
    %664 = vdwg.mxu0
    %665 = vmatpush.bf16.msra.mxu0 %v538
    %666 = vmatpush.bf16.msra.mxu0 %v537
    %667 = vmatpush.bf16.msra.mxu0 %v536
    %668 = vmatpush.bf16.msra.mxu0 %v535
    %669 = vmatpush.bf16.msra.mxu0 %v534
    %670 = vmatpush.bf16.msra.mxu0 %v533
    %671 = vmatpush.bf16.msra.mxu0 %v532
    %672 = vmatpush.bf16.msra.mxu0 %v531
    %673 = vmatmul.bf16.gmra.mxu0 %v128
    %v674 = vpop.f32.mrf.mxu0
    %v675 = vadd.f32 %v661, %v674
    %v676 = vpop.f32.mrf.mxu0
    %v677 = vadd.f32 %v663, %v676
    %678 = vdwg.mxu0
    %679 = vmatpush.bf16.msra.mxu0 %v546
    %680 = vmatpush.bf16.msra.mxu0 %v545
    %681 = vmatpush.bf16.msra.mxu0 %v544
    %682 = vmatpush.bf16.msra.mxu0 %v543
    %683 = vmatpush.bf16.msra.mxu0 %v542
    %684 = vmatpush.bf16.msra.mxu0 %v541
    %685 = vmatpush.bf16.msra.mxu0 %v540
    %686 = vmatpush.bf16.msra.mxu0 %v539
    %687 = vmatmul.bf16.gmra.mxu0 %v129
    %v688 = vpop.f32.mrf.mxu0
    %v689 = vadd.f32 %v675, %v688
    %v690 = vpop.f32.mrf.mxu0
    %v691 = vadd.f32 %v677, %v690
    %692 = vdwg.mxu0
    %693 = vmatpush.bf16.msra.mxu0 %v554
    %694 = vmatpush.bf16.msra.mxu0 %v553
    %695 = vmatpush.bf16.msra.mxu0 %v552
    %696 = vmatpush.bf16.msra.mxu0 %v551
    %697 = vmatpush.bf16.msra.mxu0 %v550
    %698 = vmatpush.bf16.msra.mxu0 %v549
    %699 = vmatpush.bf16.msra.mxu0 %v548
    %700 = vmatpush.bf16.msra.mxu0 %v547
    %701 = vmatmul.bf16.gmra.mxu0 %v130
    %v702 = vpop.f32.mrf.mxu0
    %v703 = vadd.f32 %v689, %v702
    %v704 = vpop.f32.mrf.mxu0
    %v705 = vadd.f32 %v691, %v704
    %706 = vdwg.mxu0
    %707 = vmatpush.bf16.msra.mxu0 %v562
    %708 = vmatpush.bf16.msra.mxu0 %v561
    %709 = vmatpush.bf16.msra.mxu0 %v560
    %710 = vmatpush.bf16.msra.mxu0 %v559
    %711 = vmatpush.bf16.msra.mxu0 %v558
    %712 = vmatpush.bf16.msra.mxu0 %v557
    %713 = vmatpush.bf16.msra.mxu0 %v556
    %714 = vmatpush.bf16.msra.mxu0 %v555
    %715 = vmatmul.bf16.gmra.mxu0 %v131
    %v716 = vpop.f32.mrf.mxu0
    %v717 = vadd.f32 %v703, %v716
    %v718 = vpop.f32.mrf.mxu0
    %v719 = vadd.f32 %v705, %v718
    %720 = vdwg.mxu0
    %721 = vmatpush.bf16.msra.mxu0 %v570
    %722 = vmatpush.bf16.msra.mxu0 %v569
    %723 = vmatpush.bf16.msra.mxu0 %v568
    %724 = vmatpush.bf16.msra.mxu0 %v567
    %725 = vmatpush.bf16.msra.mxu0 %v566
    %726 = vmatpush.bf16.msra.mxu0 %v565
    %727 = vmatpush.bf16.msra.mxu0 %v564
    %728 = vmatpush.bf16.msra.mxu0 %v563
    %729 = vmatmul.bf16.gmra.mxu0 %v132
    %v730 = vpop.f32.mrf.mxu0
    %v731 = vadd.f32 %v717, %v730
    %v732 = vpop.f32.mrf.mxu0
    %v733 = vadd.f32 %v719, %v732
    %734 = vdwg.mxu0
    %735 = vmatpush.bf16.msra.mxu0 %v578
    %736 = vmatpush.bf16.msra.mxu0 %v577
    %737 = vmatpush.bf16.msra.mxu0 %v576
    %738 = vmatpush.bf16.msra.mxu0 %v575
    %739 = vmatpush.bf16.msra.mxu0 %v574
    %740 = vmatpush.bf16.msra.mxu0 %v573
    %741 = vmatpush.bf16.msra.mxu0 %v572
    %742 = vmatpush.bf16.msra.mxu0 %v571
    %743 = vmatmul.bf16.gmra.mxu0 %v133
    %v744 = vpop.f32.mrf.mxu0
    %v745 = vadd.f32 %v731, %v744
    %v746 = vpop.f32.mrf.mxu0
    %v747 = vadd.f32 %v733, %v746
    %748 = vdwg.mxu0
    %749 = vmatpush.bf16.msra.mxu0 %v586
    %750 = vmatpush.bf16.msra.mxu0 %v585
    %751 = vmatpush.bf16.msra.mxu0 %v584
    %752 = vmatpush.bf16.msra.mxu0 %v583
    %753 = vmatpush.bf16.msra.mxu0 %v582
    %754 = vmatpush.bf16.msra.mxu0 %v581
    %755 = vmatpush.bf16.msra.mxu0 %v580
    %756 = vmatpush.bf16.msra.mxu0 %v579
    %757 = vmatmul.bf16.gmra.mxu0 %v134
    %v758 = vpop.f32.mrf.mxu0
    %v759 = vadd.f32 %v745, %v758
    %v760 = vpop.f32.mrf.mxu0
    %v761 = vadd.f32 %v747, %v760
    %762 = vdwg.mxu0
    %v763 = vmax.f32 %v759, 0.0
    %v764 = vmax.f32 %v761, 0.0
    %v765 = vpack.c.bf16 %v764, %v763
    %v766 = vld [vmem:[#allocation7] sm:$0xf]
    %v767 = vld [vmem:[#allocation7 + $0x4] sm:$0xf]
    %v768 = vld [vmem:[#allocation7 + $0x8] sm:$0xf]
    %v769 = vld [vmem:[#allocation7 + $0xc] sm:$0xf]
    %v770 = vld [vmem:[#allocation7 + $0x10] sm:$0xf]
    %v771 = vld [vmem:[#allocation7 + $0x14] sm:$0xf]
    %v772 = vld [vmem:[#allocation7 + $0x18] sm:$0xf]
    %v773 = vld [vmem:[#allocation7 + $0x1c] sm:$0xf]
    %v774 = vld [vmem:[#allocation7 + $0x20] sm:$0xf]
    %v775 = vld [vmem:[#allocation7 + $0x24] sm:$0xf]
    %v776 = vld [vmem:[#allocation7 + $0x28] sm:$0xf]
    %v777 = vld [vmem:[#allocation7 + $0x2c] sm:$0xf]
    %v778 = vld [vmem:[#allocation7 + $0x30] sm:$0xf]
    %v779 = vld [vmem:[#allocation7 + $0x34] sm:$0xf]
    %v780 = vld [vmem:[#allocation7 + $0x38] sm:$0xf]
    %v781 = vld [vmem:[#allocation7 + $0x3c] sm:$0xf]
    %v782 = vld [vmem:[%s4] sm:$0x1]
    %v784 = vperm.slane %v782, 0
    %v802 = vunpack.c.l.b16 %v766
    %v803 = vunpack.c.l.b16 %v767
    %v804 = vunpack.c.l.b16 %v768
    %v805 = vunpack.c.l.b16 %v769
    %v806 = vunpack.c.l.b16 %v770
    %v807 = vunpack.c.l.b16 %v771
    %v808 = vunpack.c.l.b16 %v772
    %v809 = vunpack.c.l.b16 %v773
    %v810 = vunpack.c.l.b16 %v774
    %v811 = vunpack.c.l.b16 %v775
    %v812 = vunpack.c.l.b16 %v776
    %v813 = vunpack.c.l.b16 %v777
    %v814 = vunpack.c.l.b16 %v778
    %v815 = vunpack.c.l.b16 %v779
    %v816 = vunpack.c.l.b16 %v780
    %v817 = vunpack.c.l.b16 %v781
    %v818 = vpack.c.b16 %v803, %v802
    %v819 = vpack.c.b16 %v805, %v804
    %v820 = vpack.c.b16 %v807, %v806
    %v821 = vpack.c.b16 %v809, %v808
    %v822 = vpack.c.b16 %v811, %v810
    %v823 = vpack.c.b16 %v813, %v812
    %v824 = vpack.c.b16 %v815, %v814
    %v825 = vpack.c.b16 %v817, %v816
    %834 = vmatpush.bf16.msra.mxu0 %v825
    %835 = vmatpush.bf16.msra.mxu0 %v824
    %836 = vmatpush.bf16.msra.mxu0 %v823
    %837 = vmatpush.bf16.msra.mxu0 %v822
    %838 = vmatpush.bf16.msra.mxu0 %v821
    %839 = vmatpush.bf16.msra.mxu0 %v820
    %840 = vmatpush.bf16.msra.mxu0 %v819
    %841 = vmatpush.bf16.msra.mxu0 %v818
    %842 = vmatmul.bf16.gmra.mxu0 %v765
    %v843 = vpop.f32.mrf.mxu0
    %v844 = vadd.f32 %v784, %v843
    %v845 = vpop.f32.mrf.mxu0
    %v846 = vadd.f32 %v784, %v845
    %847 = vdwg.mxu0
    %v848 = vmax.f32 %v844, 0.0
    %v849 = vmax.f32 %v846, 0.0
    %v850 = vpack.c.bf16 %v849, %v848
    %v851 = vld [vmem:[#allocation8] sm:$0xf]
    %v852 = vld [vmem:[#allocation8 + $0x4] sm:$0xf]
    %v853 = vld [vmem:[#allocation8 + $0x8] sm:$0xf]
    %v854 = vld [vmem:[#allocation8 + $0xc] sm:$0xf]
    %v855 = vld [vmem:[#allocation8 + $0x10] sm:$0xf]
    %v856 = vld [vmem:[#allocation8 + $0x14] sm:$0xf]
    %v857 = vld [vmem:[#allocation8 + $0x18] sm:$0xf]
    %v858 = vld [vmem:[#allocation8 + $0x1c] sm:$0xf]
    %v859 = vld [vmem:[#allocation8 + $0x20] sm:$0xf]
    %v860 = vld [vmem:[#allocation8 + $0x24] sm:$0xf]
    %v861 = vld [vmem:[#allocation8 + $0x28] sm:$0xf]
    %v862 = vld [vmem:[#allocation8 + $0x2c] sm:$0xf]
    %v863 = vld [vmem:[#allocation8 + $0x30] sm:$0xf]
    %v864 = vld [vmem:[#allocation8 + $0x34] sm:$0xf]
    %v865 = vld [vmem:[#allocation8 + $0x38] sm:$0xf]
    %v866 = vld [vmem:[#allocation8 + $0x3c] sm:$0xf]
    %v867 = vld [vmem:[%s6] sm:$0x1]
    %v869 = vperm.slane %v867, 0
    %v887 = vunpack.c.l.b16 %v851
    %v888 = vunpack.c.l.b16 %v852
    %v889 = vunpack.c.l.b16 %v853
    %v890 = vunpack.c.l.b16 %v854
    %v891 = vunpack.c.l.b16 %v855
    %v892 = vunpack.c.l.b16 %v856
    %v893 = vunpack.c.l.b16 %v857
    %v894 = vunpack.c.l.b16 %v858
    %v895 = vunpack.c.l.b16 %v859
    %v896 = vunpack.c.l.b16 %v860
    %v897 = vunpack.c.l.b16 %v861
    %v898 = vunpack.c.l.b16 %v862
    %v899 = vunpack.c.l.b16 %v863
    %v900 = vunpack.c.l.b16 %v864
    %v901 = vunpack.c.l.b16 %v865
    %v902 = vunpack.c.l.b16 %v866
    %v903 = vpack.c.b16 %v888, %v887
    %v904 = vpack.c.b16 %v890, %v889
    %v905 = vpack.c.b16 %v892, %v891
    %v906 = vpack.c.b16 %v894, %v893
    %v907 = vpack.c.b16 %v896, %v895
    %v908 = vpack.c.b16 %v898, %v897
    %v909 = vpack.c.b16 %v900, %v899
    %v910 = vpack.c.b16 %v902, %v901
    %919 = vmatpush.bf16.msra.mxu0 %v910
    %920 = vmatpush.bf16.msra.mxu0 %v909
    %921 = vmatpush.bf16.msra.mxu0 %v908
    %922 = vmatpush.bf16.msra.mxu0 %v907
    %923 = vmatpush.bf16.msra.mxu0 %v906
    %924 = vmatpush.bf16.msra.mxu0 %v905
    %925 = vmatpush.bf16.msra.mxu0 %v904
    %926 = vmatpush.bf16.msra.mxu0 %v903
    %927 = vmatmul.bf16.gmra.mxu0 %v850
    %v928 = vpop.f32.mrf.mxu0
    %v929 = vadd.f32 %v869, %v928
    %v930 = vpop.f32.mrf.mxu0
    %v931 = vadd.f32 %v869, %v930
    %932 = vdwg.mxu0
    %v933 = vmax.f32 %v929, 0.0
    %v934 = vmax.f32 %v931, 0.0
    %v935 = vpack.c.bf16 %v934, %v933
    %v936 = vld [vmem:[#allocation10] sm:$0xf]
    %v937 = vld [vmem:[#allocation10 + $0x4] sm:$0xf]
    %v938 = vld [vmem:[#allocation10 + $0x8] sm:$0xf]
    %v939 = vld [vmem:[#allocation10 + $0xc] sm:$0xf]
    %v940 = vld [vmem:[#allocation10 + $0x10] sm:$0xf]
    %v941 = vld [vmem:[#allocation10 + $0x14] sm:$0xf]
    %v942 = vld [vmem:[#allocation10 + $0x18] sm:$0xf]
    %v943 = vld [vmem:[#allocation10 + $0x1c] sm:$0xf]
    %v944 = vld [vmem:[#allocation10 + $0x20] sm:$0xf]
    %v945 = vld [vmem:[#allocation10 + $0x24] sm:$0xf]
    %v946 = vld [vmem:[#allocation10 + $0x28] sm:$0xf]
    %v947 = vld [vmem:[#allocation10 + $0x2c] sm:$0xf]
    %v948 = vld [vmem:[#allocation10 + $0x30] sm:$0xf]
    %v949 = vld [vmem:[#allocation10 + $0x34] sm:$0xf]
    %v950 = vld [vmem:[#allocation10 + $0x38] sm:$0xf]
    %v951 = vld [vmem:[#allocation10 + $0x3c] sm:$0xf]
    %v952 = vld [vmem:[%s8] sm:$0x1]
    %v954 = vperm.slane %v952, 0
    %v972 = vunpack.c.l.b16 %v936
    %v973 = vunpack.c.l.b16 %v937
    %v974 = vunpack.c.l.b16 %v938
    %v975 = vunpack.c.l.b16 %v939
    %v976 = vunpack.c.l.b16 %v940
    %v977 = vunpack.c.l.b16 %v941
    %v978 = vunpack.c.l.b16 %v942
    %v979 = vunpack.c.l.b16 %v943
    %v980 = vunpack.c.l.b16 %v944
    %v981 = vunpack.c.l.b16 %v945
    %v982 = vunpack.c.l.b16 %v946
    %v983 = vunpack.c.l.b16 %v947
    %v984 = vunpack.c.l.b16 %v948
    %v985 = vunpack.c.l.b16 %v949
    %v986 = vunpack.c.l.b16 %v950
    %v987 = vunpack.c.l.b16 %v951
    %v988 = vpack.c.b16 %v973, %v972
    %v989 = vpack.c.b16 %v975, %v974
    %v990 = vpack.c.b16 %v977, %v976
    %v991 = vpack.c.b16 %v979, %v978
    %v992 = vpack.c.b16 %v981, %v980
    %v993 = vpack.c.b16 %v983, %v982
    %v994 = vpack.c.b16 %v985, %v984
    %v995 = vpack.c.b16 %v987, %v986
    %1004 = vmatpush.bf16.msra.mxu0 %v995
    %1005 = vmatpush.bf16.msra.mxu0 %v994
    %1006 = vmatpush.bf16.msra.mxu0 %v993
    %1007 = vmatpush.bf16.msra.mxu0 %v992
    %1008 = vmatpush.bf16.msra.mxu0 %v991
    %1009 = vmatpush.bf16.msra.mxu0 %v990
    %1010 = vmatpush.bf16.msra.mxu0 %v989
    %1011 = vmatpush.bf16.msra.mxu0 %v988
    %1012 = vmatmul.bf16.gmra.mxu0 %v935
    %v1013 = vpop.f32.mrf.mxu0
    %v1014 = vadd.f32 %v954, %v1013
    %v1015 = vpop.f32.mrf.mxu0
    %v1016 = vadd.f32 %v954, %v1015
    %1017 = vdwg.mxu0
    %v1018 = vpack.c.bf16 %v1014, %v1014
    %v1019 = vpack.c.bf16 %v1016, %v1016
    %1020 = vst [vmem:[#allocation11] sm:$0xf] %v1018
    %1021 = vst [vmem:[#allocation11 + $0x4] sm:$0xf] %v1019
    // Predicated region
    $region58: #{tpu_custom_call.1} parent=1 // pred_check
      _
    $region59: #{tpu_custom_call.1} parent=1 // pred_check_branch
      %1023 = sbr.rel (0) target = $region61
    $region60: #{tpu_custom_call.1} parent=1 // pred_region
      %1025 = vsyncadd [#allocation4], 0
      %s1026 = sshll.u32 [#allocation11], 4
      %s1027 = int_to_ptr.vmem [resolvable:$true] %s1026
      %s1028 = sshll.u32 %s9, 4
      %s1029 = int_to_ptr.hbm [resolvable:$true] %s1028
      %1034 = dma.vmem_to_hbm [thread:$0]  %s1027, 128, %s1029, [#allocation4], 64, 64, 4
    $region61: #{tpu_custom_call.1} parent=1 // pred_fallthru
      _
    // Predicated region
    $region62: #{tpu_custom_call.1} parent=1 // pred_check
      _
    $region63: #{tpu_custom_call.1} parent=1 // pred_check_branch
      %1036 = sbr.rel (0) target = $region65
    $region64: #{tpu_custom_call.1} parent=1 // pred_region
      %1038 = dma.done [#allocation4], 128
    $region65: #{tpu_custom_call.1} parent=1 // pred_fallthru
      _
    %1039 = vsyncpa [#allocation3], 1
    %1040 = vsyncpa [#allocation6], 1
    %1041 = vsyncpa [#allocation9], 1
    %1042 = vsyncpa [#allocation4], 1

</llo_original>
